<compile_context>
chip_gen: v5e
topology: v5e:2x2
jax: 0.10.0
libtpu: 0.0.40
codegen_flags: <defaults>
</compile_context>

<pallas_src>
import functools

import jax
import jax.numpy as jnp
from jax.experimental import pallas as pl
from jax.experimental.pallas import tpu as pltpu


# ----------------------------- Pallas kernels -----------------------------

def _conv_stage_kernel(p_ref, w_ref, b_ref, o_ref):
    """Fused conv stage: GEMM + bias + 2x2 max-pool + ReLU.

    p_ref: (4, mb, K) bf16   patch rows; leading axis = pool-window tap
    w_ref: (K, N)     bf16   conv weight as [kh, kw, cin] x cout
    b_ref: (1, N)     f32    conv bias
    o_ref: (mb, N)    f32    pooled + ReLU'd activation (rows = (b, po, qo))
    """
    w = w_ref[...]
    y0 = jnp.dot(p_ref[0], w, preferred_element_type=jnp.float32)
    y1 = jnp.dot(p_ref[1], w, preferred_element_type=jnp.float32)
    y2 = jnp.dot(p_ref[2], w, preferred_element_type=jnp.float32)
    y3 = jnp.dot(p_ref[3], w, preferred_element_type=jnp.float32)
    m = jnp.maximum(jnp.maximum(y0, y1), jnp.maximum(y2, y3))
    # max(y_t + b) == max(y_t) + b, and ReLU commutes with max-pool.
    o_ref[...] = jnp.maximum(m + b_ref[...], 0.0)


def _tail_kernel(x_ref, w3_ref, b3_ref, w1_ref, b1_ref, w2_ref, b2_ref, o_ref):
    """Fused tail: conv3 (folded) + pool + ReLU + fc1 + ReLU + fc2.

    x_ref : (Bb, 256)      bf16   conv2 pooled output, flattened (h*2+w)*64+c
    w3_ref: (4, 256, 64)   bf16   per-output-position effective conv3 weights
    b3_ref: (1, 64)        f32
    w1_ref: (64, 512)      bf16   fc1 weight (K, N)
    b1_ref: (1, 512)       f32
    w2_ref: (512, n_act)   bf16   fc2 weight (K, N)
    b2_ref: (1, n_act)     f32
    o_ref : (Bb, n_act)    f32
    """
    x = x_ref[...]
    y0 = jnp.dot(x, w3_ref[0], preferred_element_type=jnp.float32)
    y1 = jnp.dot(x, w3_ref[1], preferred_element_type=jnp.float32)
    y2 = jnp.dot(x, w3_ref[2], preferred_element_type=jnp.float32)
    y3 = jnp.dot(x, w3_ref[3], preferred_element_type=jnp.float32)
    # max over the 4 conv3 output positions == MaxPool2d(2) of the 2x2 map.
    feats = jnp.maximum(
        jnp.maximum(jnp.maximum(y0, y1), jnp.maximum(y2, y3)) + b3_ref[...], 0.0
    )
    h = jnp.maximum(
        jnp.dot(feats.astype(jnp.bfloat16), w1_ref[...],
                preferred_element_type=jnp.float32) + b1_ref[...],
        0.0,
    )
    o_ref[...] = (
        jnp.dot(h.astype(jnp.bfloat16), w2_ref[...],
                preferred_element_type=jnp.float32) + b2_ref[...]
    )


# ----------------------------- Pallas wrappers -----------------------------

def _pick_m_block(mp, cap=512):
    if mp <= cap:
        return mp
    for cand in (cap, 256, 128, 64, 32, 16, 8):
        if mp % cand == 0:
            return cand
    return mp


def pallas_conv_stage(patches, w, b2d):
    """patches: (4, Mp, K) bf16, w: (K, N) bf16, b2d: (1, N) f32 -> (Mp, N) f32."""
    t, mp, k = patches.shape
    kw_, n = w.shape
    assert t == 4 and kw_ == k
    mb = _pick_m_block(mp)
    grid = (mp // mb,)
    return pl.pallas_call(
        _conv_stage_kernel,
        grid=grid,
        out_shape=jax.ShapeDtypeStruct((mp, n), jnp.float32),
        in_specs=[
            pl.BlockSpec((4, mb, k), lambda i: (0, i, 0)),
            pl.BlockSpec((k, n), lambda i: (0, 0)),
            pl.BlockSpec((1, n), lambda i: (0, 0)),
        ],
        out_specs=pl.BlockSpec((mb, n), lambda i: (i, 0)),
        compiler_params=pltpu.CompilerParams(dimension_semantics=("parallel",)),
    )(patches, w, b2d)


def pallas_tail(x2f, w3e, b3, w1, b1, w2, b2):
    """x2f: (B, 256) bf16 -> Q values (B, n_actions) f32."""
    bsz, k = x2f.shape
    n = w2.shape[1]
    bb = bsz if bsz <= 1024 else 1024
    assert bsz % bb == 0
    grid = (bsz // bb,)
    return pl.pallas_call(
        _tail_kernel,
        grid=grid,
        out_shape=jax.ShapeDtypeStruct((bsz, n), jnp.float32),
        in_specs=[
            pl.BlockSpec((bb, k), lambda i: (i, 0)),
            pl.BlockSpec(w3e.shape, lambda i: (0, 0, 0)),
            pl.BlockSpec(b3.shape, lambda i: (0, 0)),
            pl.BlockSpec(w1.shape, lambda i: (0, 0)),
            pl.BlockSpec(b1.shape, lambda i: (0, 0)),
            pl.BlockSpec(w2.shape, lambda i: (0, 0)),
            pl.BlockSpec(b2.shape, lambda i: (0, 0)),
        ],
        out_specs=pl.BlockSpec((bb, n), lambda i: (i, 0)),
        compiler_params=pltpu.CompilerParams(dimension_semantics=("parallel",)),
    )(x2f, w3e, b3, w1, b1, w2, b2)


# --------------------- im2col with pool-tap-major row order ---------------------

def im2col_pool_taps(x, kh, kw, stride, pad):
    """x: (B, H, W, C) f32 -> (4, B*(Ho//2)*(Wo//2), kh*kw*C) bf16.

    Row layout: axis 0 = pool tap t = th*2 + tw, axis 1 = (b, po, qo) where the
    corresponding conv output position is (2*po+th, 2*qo+tw).  K axis ordered
    [kh, kw, cin] to match the prepared conv weight layout.
    """
    b, h, w, c = x.shape
    xp = jnp.pad(x, ((0, 0), (pad, pad), (pad, pad), (0, 0)))
    ho = (h + 2 * pad - kh) // stride + 1
    wo = (w + 2 * pad - kw) // stride + 1
    cols = []
    for i in range(kh):
        for j in range(kw):
            cols.append(
                xp[:, i: i + stride * ho: stride, j: j + stride * wo: stride, :]
            )
    k = kh * kw * c
    p = jnp.stack(cols, axis=3).reshape(b, ho, wo, k)          # [kh,kw,cin] order
    p = p.reshape(b, ho // 2, 2, wo // 2, 2, k)
    p = jnp.transpose(p, (2, 4, 0, 1, 3, 5))                   # (th,tw,b,po,qo,K)
    return p.reshape(4, b * (ho // 2) * (wo // 2), k).astype(jnp.bfloat16)


# ------------------------------ parameter prep ------------------------------

def init_params(n_actions=6, hidden_size=512, seed=0):
    key = jax.random.PRNGKey(seed)
    ks = jax.random.split(key, 10)

    def uinit(k, shape, fan_in):
        bound = 1.0 / jnp.sqrt(jnp.float32(fan_in))
        return jax.random.uniform(k, shape, jnp.float32, -bound, bound)

    p = {}
    p["conv1_w"] = uinit(ks[0], (32, 4, 8, 8), 4 * 8 * 8)
    p["conv1_b"] = uinit(ks[1], (32,), 4 * 8 * 8)
    p["conv2_w"] = uinit(ks[2], (64, 32, 4, 4), 32 * 4 * 4)
    p["conv2_b"] = uinit(ks[3], (64,), 32 * 4 * 4)
    p["conv3_w"] = uinit(ks[4], (64, 64, 3, 3), 64 * 3 * 3)
    p["conv3_b"] = uinit(ks[5], (64,), 64 * 3 * 3)
    p["fc1_w"] = uinit(ks[6], (hidden_size, 64), 64)          # PyTorch (out, in)
    p["fc1_b"] = uinit(ks[7], (hidden_size,), 64)
    p["fc2_w"] = uinit(ks[8], (n_actions, hidden_size), hidden_size)
    p["fc2_b"] = uinit(ks[9], (n_actions,), hidden_size)
    return p


def prepare_params(params):
    """One-time weight layout prep (no transposes inside the traced forward)."""
    def conv_w(w):  # (Cout, Cin, KH, KW) -> (KH*KW*Cin, Cout) bf16
        cout, cin, khd, kwd = w.shape
        return (jnp.transpose(w, (2, 3, 1, 0))
                .reshape(khd * kwd * cin, cout).astype(jnp.bfloat16))

    prep = {
        "c1_w": conv_w(params["conv1_w"]),                        # (256, 32)
        "c1_b": params["conv1_b"].reshape(1, -1).astype(jnp.float32),
        "c2_w": conv_w(params["conv2_w"]),                        # (512, 64)
        "c2_b": params["conv2_b"].reshape(1, -1).astype(jnp.float32),
        "c3_b": params["conv3_b"].reshape(1, -1).astype(jnp.float32),
        "fc1_w": params["fc1_w"].T.astype(jnp.bfloat16),          # (64, 512)
        "fc1_b": params["fc1_b"].reshape(1, -1).astype(jnp.float32),
        "fc2_w": params["fc2_w"].T.astype(jnp.bfloat16),          # (512, n_act)
        "fc2_b": params["fc2_b"].reshape(1, -1).astype(jnp.float32),
    }
    # conv3 (3x3, pad 1, stride 1 on a 2x2 map) folded into 4 effective
    # (256, 64) GEMMs, one per output position (ho, wo):
    #   W_eff[ho*2+wo][(h'*2+w')*64 + cin, cout] = w3[cout, cin, h'-ho+1, w'-wo+1]
    w3t = jnp.transpose(params["conv3_w"], (2, 3, 1, 0))          # (kh, kw, cin, cout)
    blocks = []
    for ho in range(2):
        for wo in range(2):
            sub = [w3t[hp - ho + 1, wp - wo + 1]
                   for hp in range(2) for wp in range(2)]          # each (64, 64)
            blocks.append(jnp.concatenate(sub, axis=0))            # (256, 64)
    prep["c3_w"] = jnp.stack(blocks, axis=0).astype(jnp.bfloat16)  # (4, 256, 64)
    return prep


# ------------------------------ model forward ------------------------------

@jax.jit
def neural_network_forward(frame_nchw, prep):
    # layout: frame_nchw is NCHW (PyTorch convention); internally NHWC so the
    # channel axis maps to the TPU lane dimension.
    x = jnp.transpose(frame_nchw, (0, 2, 3, 1)).astype(jnp.float32)
    bsz = x.shape[0]

    # Stage 1: conv1 + pool + ReLU (one fused Pallas kernel).
    p1 = im2col_pool_taps(x, 8, 8, 4, 2)                          # (4, B*64, 256)
    x1 = pallas_conv_stage(p1, prep["c1_w"], prep["c1_b"])        # (B*64, 32)
    x1 = x1.reshape(bsz, 8, 8, 32)

    # Stage 2: conv2 + pool + ReLU (one fused Pallas kernel).
    p2 = im2col_pool_taps(x1, 4, 4, 2, 1)                         # (4, B*4, 512)
    x2 = pallas_conv_stage(p2, prep["c2_w"], prep["c2_b"])        # (B*4, 64)
    x2f = x2.reshape(bsz, 256).astype(jnp.bfloat16)               # (h*2+w)*64 + c

    # Tail: conv3 + pool + ReLU + fc1 + ReLU + fc2 (one fused Pallas kernel).
    # FlattenTorch is a no-op here because the final spatial size is 1x1.
    return pallas_tail(x2f, prep["c3_w"], prep["c3_b"],
                       prep["fc1_w"], prep["fc1_b"],
                       prep["fc2_w"], prep["fc2_b"])


# ------------------------------ pure-JAX reference ------------------------------

def reference_forward(frame_nchw, params):
    x = frame_nchw.astype(jnp.float32)

    def conv(x, w, b, stride, pad):
        y = jax.lax.conv_general_dilated(
            x, w, window_strides=(stride, stride),
            padding=[(pad, pad), (pad, pad)],
            dimension_numbers=("NCHW", "OIHW", "NCHW"),
            precision=jax.lax.Precision.HIGHEST,
        )
        return y + b[None, :, None, None]

    def pool_relu(x):
        b, c, h, w = x.shape
        x = x.reshape(b, c, h // 2, 2, w // 2, 2).max(axis=(3, 5))
        return jnp.maximum(x, 0.0)

    x = pool_relu(conv(x, params["conv1_w"], params["conv1_b"], 4, 2))
    x = pool_relu(conv(x, params["conv2_w"], params["conv2_b"], 2, 1))
    x = pool_relu(conv(x, params["conv3_w"], params["conv3_b"], 1, 1))
    feats = x.reshape(x.shape[0], -1)
    h = jnp.maximum(
        jnp.dot(feats, params["fc1_w"].T, precision=jax.lax.Precision.HIGHEST)
        + params["fc1_b"], 0.0)
    return (jnp.dot(h, params["fc2_w"].T, precision=jax.lax.Precision.HIGHEST)
            + params["fc2_b"])


# ---------------------------------- main ----------------------------------

if __name__ == "__main__":
    n_actions = 6
    params = init_params(n_actions=n_actions, hidden_size=512, seed=0)
    prep = prepare_params(params)

    # Smallest input consistent with Linear(64, ...): (B=2, C=4, H=W=64).
    key = jax.random.PRNGKey(0)
    frame = jax.random.normal(key, (2, 4, 64, 64), dtype=jnp.float32)

    q = neural_network_forward(frame, prep)
    q = jax.block_until_ready(q)
    assert q.shape == (2, n_actions), q.shape

    q_ref = reference_forward(frame, params)
    assert jnp.allclose(q, q_ref, rtol=1e-2, atol=1e-2), (
        "mismatch vs reference: max abs err = "
        f"{float(jnp.max(jnp.abs(q - q_ref)))}"
    )

    print("KERNEL_OK")
</pallas_src>

<mosaic_0001>
module attributes {stable_mosaic.version = 11 : i64} {
  func.func @_conv_stage_kernel(%arg0: i32, %arg1: memref<4x128x256xbf16, #tpu.memory_space<vmem>>, %arg2: memref<256x32xbf16, #tpu.memory_space<vmem>>, %arg3: memref<1x32xf32, #tpu.memory_space<vmem>>, %arg4: memref<128x32xf32, #tpu.memory_space<vmem>>) attributes {dimension_semantics = [#tpu.dimension_semantics<parallel>], iteration_bounds = array<i64: 1>, scalar_prefetch = 0 : i64, scratch_operands = 0 : i64, tpu.core_type = #tpu.core_type<tc>, window_params = [{transform_indices = @transform_0, window_bounds = array<i64: 4, 128, 256>}, {pipeline_mode = #tpu.pipeline_mode<synchronous>, transform_indices = @transform_1, window_bounds = array<i64: 256, 32>}, {pipeline_mode = #tpu.pipeline_mode<synchronous>, transform_indices = @transform_2, window_bounds = array<i64: 1, 32>}, {transform_indices = @transform_3, window_bounds = array<i64: 128, 32>}]} {
    %c0 = arith.constant 0 : index
    %c0_0 = arith.constant 0 : index
    %0 = vector.load %arg2[%c0, %c0_0] : memref<256x32xbf16, #tpu.memory_space<vmem>>, vector<256x32xbf16>
    %c0_1 = arith.constant 0 : index
    %c0_2 = arith.constant 0 : index
    %c0_3 = arith.constant 0 : index
    %1 = vector.load %arg1[%c0_1, %c0_2, %c0_3] : memref<4x128x256xbf16, #tpu.memory_space<vmem>>, vector<1x128x256xbf16>
    %2 = vector.shape_cast %1 : vector<1x128x256xbf16> to vector<128x256xbf16>
    %cst = arith.constant dense<0.000000e+00> : vector<128x32xf32>
    %3 = tpu.matmul %2, %0, %cst {dimension_numbers = #tpu.dot_dimension_numbers<[1], [0], [0], [1], [0, 0, 1, 1], [], []>} : vector<128x256xbf16>, vector<256x32xbf16>, vector<128x32xf32> -> vector<128x32xf32>
    %c1 = arith.constant 1 : index
    %c0_4 = arith.constant 0 : index
    %c0_5 = arith.constant 0 : index
    %4 = vector.load %arg1[%c1, %c0_4, %c0_5] : memref<4x128x256xbf16, #tpu.memory_space<vmem>>, vector<1x128x256xbf16>
    %5 = vector.shape_cast %4 : vector<1x128x256xbf16> to vector<128x256xbf16>
    %cst_6 = arith.constant dense<0.000000e+00> : vector<128x32xf32>
    %6 = tpu.matmul %5, %0, %cst_6 {dimension_numbers = #tpu.dot_dimension_numbers<[1], [0], [0], [1], [0, 0, 1, 1], [], []>} : vector<128x256xbf16>, vector<256x32xbf16>, vector<128x32xf32> -> vector<128x32xf32>
    %c2 = arith.constant 2 : index
    %c0_7 = arith.constant 0 : index
    %c0_8 = arith.constant 0 : index
    %7 = vector.load %arg1[%c2, %c0_7, %c0_8] : memref<4x128x256xbf16, #tpu.memory_space<vmem>>, vector<1x128x256xbf16>
    %8 = vector.shape_cast %7 : vector<1x128x256xbf16> to vector<128x256xbf16>
    %cst_9 = arith.constant dense<0.000000e+00> : vector<128x32xf32>
    %9 = tpu.matmul %8, %0, %cst_9 {dimension_numbers = #tpu.dot_dimension_numbers<[1], [0], [0], [1], [0, 0, 1, 1], [], []>} : vector<128x256xbf16>, vector<256x32xbf16>, vector<128x32xf32> -> vector<128x32xf32>
    %c3 = arith.constant 3 : index
    %c0_10 = arith.constant 0 : index
    %c0_11 = arith.constant 0 : index
    %10 = vector.load %arg1[%c3, %c0_10, %c0_11] : memref<4x128x256xbf16, #tpu.memory_space<vmem>>, vector<1x128x256xbf16>
    %11 = vector.shape_cast %10 : vector<1x128x256xbf16> to vector<128x256xbf16>
    %cst_12 = arith.constant dense<0.000000e+00> : vector<128x32xf32>
    %12 = tpu.matmul %11, %0, %cst_12 {dimension_numbers = #tpu.dot_dimension_numbers<[1], [0], [0], [1], [0, 0, 1, 1], [], []>} : vector<128x256xbf16>, vector<256x32xbf16>, vector<128x32xf32> -> vector<128x32xf32>
    %13 = arith.maximumf %3, %6 : vector<128x32xf32>
    %14 = arith.maximumf %9, %12 : vector<128x32xf32>
    %15 = arith.maximumf %13, %14 : vector<128x32xf32>
    %c0_13 = arith.constant 0 : index
    %c0_14 = arith.constant 0 : index
    %16 = vector.load %arg3[%c0_13, %c0_14] : memref<1x32xf32, #tpu.memory_space<vmem>>, vector<1x32xf32>
    %17 = vector.broadcast %16 : vector<1x32xf32> to vector<128x32xf32>
    %18 = arith.addf %15, %17 : vector<128x32xf32>
    %cst_15 = arith.constant 0.000000e+00 : f32
    %19 = vector.broadcast %cst_15 : f32 to vector<128x32xf32>
    %20 = arith.maximumf %18, %19 : vector<128x32xf32>
    %c0_16 = arith.constant 0 : index
    %c0_17 = arith.constant 0 : index
    %21 = vector.load %arg4[%c0_16, %c0_17] : memref<128x32xf32, #tpu.memory_space<vmem>>, vector<128x32xf32>
    tpu.vector_store %arg4[%c0_16, %c0_17], %20 {strides = array<i32>} : memref<128x32xf32, #tpu.memory_space<vmem>>, vector<128x32xf32>,
    return
  }
  func.func @transform_0(%arg0: i32) -> (i32, i32, i32) {
    %c0_i32 = arith.constant 0 : i32
    %c0_i32_0 = arith.constant 0 : i32
    %c0_i32_1 = arith.constant 0 : i32
    return %c0_i32, %arg0, %c0_i32_0 : i32, i32, i32
  }
  func.func @transform_1(%arg0: i32) -> (i32, i32) {
    %c0_i32 = arith.constant 0 : i32
    %c0_i32_0 = arith.constant 0 : i32
    %c0_i32_1 = arith.constant 0 : i32
    return %c0_i32, %c0_i32_0 : i32, i32
  }
  func.func @transform_2(%arg0: i32) -> (i32, i32) {
    %c0_i32 = arith.constant 0 : i32
    %c0_i32_0 = arith.constant 0 : i32
    %c0_i32_1 = arith.constant 0 : i32
    return %c0_i32, %c0_i32_0 : i32, i32
  }
  func.func @transform_3(%arg0: i32) -> (i32, i32) {
    %c0_i32 = arith.constant 0 : i32
    %c0_i32_0 = arith.constant 0 : i32
    return %arg0, %c0_i32 : i32, i32
  }
}

module attributes {stable_mosaic.version = 11 : i64} {
  func.func @_conv_stage_kernel(%arg0: i32, %arg1: memref<4x8x512xbf16, #tpu.memory_space<vmem>>, %arg2: memref<512x64xbf16, #tpu.memory_space<vmem>>, %arg3: memref<1x64xf32, #tpu.memory_space<vmem>>, %arg4: memref<8x64xf32, #tpu.memory_space<vmem>>) attributes {dimension_semantics = [#tpu.dimension_semantics<parallel>], iteration_bounds = array<i64: 1>, scalar_prefetch = 0 : i64, scratch_operands = 0 : i64, tpu.core_type = #tpu.core_type<tc>, window_params = [{transform_indices = @transform_0, window_bounds = array<i64: 4, 8, 512>}, {pipeline_mode = #tpu.pipeline_mode<synchronous>, transform_indices = @transform_1, window_bounds = array<i64: 512, 64>}, {pipeline_mode = #tpu.pipeline_mode<synchronous>, transform_indices = @transform_2, window_bounds = array<i64: 1, 64>}, {transform_indices = @transform_3, window_bounds = array<i64: 8, 64>}]} {
    %c0 = arith.constant 0 : index
    %c0_0 = arith.constant 0 : index
    %0 = vector.load %arg2[%c0, %c0_0] : memref<512x64xbf16, #tpu.memory_space<vmem>>, vector<512x64xbf16>
    %c0_1 = arith.constant 0 : index
    %c0_2 = arith.constant 0 : index
    %c0_3 = arith.constant 0 : index
    %1 = vector.load %arg1[%c0_1, %c0_2, %c0_3] : memref<4x8x512xbf16, #tpu.memory_space<vmem>>, vector<1x8x512xbf16>
    %2 = vector.shape_cast %1 : vector<1x8x512xbf16> to vector<8x512xbf16>
    %cst = arith.constant dense<0.000000e+00> : vector<8x64xf32>
    %3 = tpu.matmul %2, %0, %cst {dimension_numbers = #tpu.dot_dimension_numbers<[1], [0], [0], [1], [0, 0, 1, 1], [], []>} : vector<8x512xbf16>, vector<512x64xbf16>, vector<8x64xf32> -> vector<8x64xf32>
    %c1 = arith.constant 1 : index
    %c0_4 = arith.constant 0 : index
    %c0_5 = arith.constant 0 : index
    %4 = vector.load %arg1[%c1, %c0_4, %c0_5] : memref<4x8x512xbf16, #tpu.memory_space<vmem>>, vector<1x8x512xbf16>
    %5 = vector.shape_cast %4 : vector<1x8x512xbf16> to vector<8x512xbf16>
    %cst_6 = arith.constant dense<0.000000e+00> : vector<8x64xf32>
    %6 = tpu.matmul %5, %0, %cst_6 {dimension_numbers = #tpu.dot_dimension_numbers<[1], [0], [0], [1], [0, 0, 1, 1], [], []>} : vector<8x512xbf16>, vector<512x64xbf16>, vector<8x64xf32> -> vector<8x64xf32>
    %c2 = arith.constant 2 : index
    %c0_7 = arith.constant 0 : index
    %c0_8 = arith.constant 0 : index
    %7 = vector.load %arg1[%c2, %c0_7, %c0_8] : memref<4x8x512xbf16, #tpu.memory_space<vmem>>, vector<1x8x512xbf16>
    %8 = vector.shape_cast %7 : vector<1x8x512xbf16> to vector<8x512xbf16>
    %cst_9 = arith.constant dense<0.000000e+00> : vector<8x64xf32>
    %9 = tpu.matmul %8, %0, %cst_9 {dimension_numbers = #tpu.dot_dimension_numbers<[1], [0], [0], [1], [0, 0, 1, 1], [], []>} : vector<8x512xbf16>, vector<512x64xbf16>, vector<8x64xf32> -> vector<8x64xf32>
    %c3 = arith.constant 3 : index
    %c0_10 = arith.constant 0 : index
    %c0_11 = arith.constant 0 : index
    %10 = vector.load %arg1[%c3, %c0_10, %c0_11] : memref<4x8x512xbf16, #tpu.memory_space<vmem>>, vector<1x8x512xbf16>
    %11 = vector.shape_cast %10 : vector<1x8x512xbf16> to vector<8x512xbf16>
    %cst_12 = arith.constant dense<0.000000e+00> : vector<8x64xf32>
    %12 = tpu.matmul %11, %0, %cst_12 {dimension_numbers = #tpu.dot_dimension_numbers<[1], [0], [0], [1], [0, 0, 1, 1], [], []>} : vector<8x512xbf16>, vector<512x64xbf16>, vector<8x64xf32> -> vector<8x64xf32>
    %13 = arith.maximumf %3, %6 : vector<8x64xf32>
    %14 = arith.maximumf %9, %12 : vector<8x64xf32>
    %15 = arith.maximumf %13, %14 : vector<8x64xf32>
    %c0_13 = arith.constant 0 : index
    %c0_14 = arith.constant 0 : index
    %16 = vector.load %arg3[%c0_13, %c0_14] : memref<1x64xf32, #tpu.memory_space<vmem>>, vector<1x64xf32>
    %17 = vector.broadcast %16 : vector<1x64xf32> to vector<8x64xf32>
    %18 = arith.addf %15, %17 : vector<8x64xf32>
    %cst_15 = arith.constant 0.000000e+00 : f32
    %19 = vector.broadcast %cst_15 : f32 to vector<8x64xf32>
    %20 = arith.maximumf %18, %19 : vector<8x64xf32>
    %c0_16 = arith.constant 0 : index
    %c0_17 = arith.constant 0 : index
    %21 = vector.load %arg4[%c0_16, %c0_17] : memref<8x64xf32, #tpu.memory_space<vmem>>, vector<8x64xf32>
    tpu.vector_store %arg4[%c0_16, %c0_17], %20 {strides = array<i32>} : memref<8x64xf32, #tpu.memory_space<vmem>>, vector<8x64xf32>,
    return
  }
  func.func @transform_0(%arg0: i32) -> (i32, i32, i32) {
    %c0_i32 = arith.constant 0 : i32
    %c0_i32_0 = arith.constant 0 : i32
    %c0_i32_1 = arith.constant 0 : i32
    return %c0_i32, %arg0, %c0_i32_0 : i32, i32, i32
  }
  func.func @transform_1(%arg0: i32) -> (i32, i32) {
    %c0_i32 = arith.constant 0 : i32
    %c0_i32_0 = arith.constant 0 : i32
    %c0_i32_1 = arith.constant 0 : i32
    return %c0_i32, %c0_i32_0 : i32, i32
  }
  func.func @transform_2(%arg0: i32) -> (i32, i32) {
    %c0_i32 = arith.constant 0 : i32
    %c0_i32_0 = arith.constant 0 : i32
    %c0_i32_1 = arith.constant 0 : i32
    return %c0_i32, %c0_i32_0 : i32, i32
  }
  func.func @transform_3(%arg0: i32) -> (i32, i32) {
    %c0_i32 = arith.constant 0 : i32
    %c0_i32_0 = arith.constant 0 : i32
    return %arg0, %c0_i32 : i32, i32
  }
}

module attributes {stable_mosaic.version = 11 : i64} {
  func.func @_tail_kernel(%arg0: i32, %arg1: memref<2x256xbf16, #tpu.memory_space<vmem>>, %arg2: memref<4x256x64xbf16, #tpu.memory_space<vmem>>, %arg3: memref<1x64xf32, #tpu.memory_space<vmem>>, %arg4: memref<64x512xbf16, #tpu.memory_space<vmem>>, %arg5: memref<1x512xf32, #tpu.memory_space<vmem>>, %arg6: memref<512x6xbf16, #tpu.memory_space<vmem>>, %arg7: memref<1x6xf32, #tpu.memory_space<vmem>>, %arg8: memref<2x6xf32, #tpu.memory_space<vmem>>) attributes {dimension_semantics = [#tpu.dimension_semantics<parallel>], iteration_bounds = array<i64: 1>, scalar_prefetch = 0 : i64, scratch_operands = 0 : i64, tpu.core_type = #tpu.core_type<tc>, window_params = [{transform_indices = @transform_0, window_bounds = array<i64: 2, 256>}, {pipeline_mode = #tpu.pipeline_mode<synchronous>, transform_indices = @transform_1, window_bounds = array<i64: 4, 256, 64>}, {pipeline_mode = #tpu.pipeline_mode<synchronous>, transform_indices = @transform_2, window_bounds = array<i64: 1, 64>}, {pipeline_mode = #tpu.pipeline_mode<synchronous>, transform_indices = @transform_3, window_bounds = array<i64: 64, 512>}, {pipeline_mode = #tpu.pipeline_mode<synchronous>, transform_indices = @transform_4, window_bounds = array<i64: 1, 512>}, {pipeline_mode = #tpu.pipeline_mode<synchronous>, transform_indices = @transform_5, window_bounds = array<i64: 512, 6>}, {pipeline_mode = #tpu.pipeline_mode<synchronous>, transform_indices = @transform_6, window_bounds = array<i64: 1, 6>}, {transform_indices = @transform_7, window_bounds = array<i64: 2, 6>}]} {
    %c0 = arith.constant 0 : index
    %c0_0 = arith.constant 0 : index
    %0 = vector.load %arg1[%c0, %c0_0] : memref<2x256xbf16, #tpu.memory_space<vmem>>, vector<2x256xbf16>
    %c0_1 = arith.constant 0 : index
    %c0_2 = arith.constant 0 : index
    %c0_3 = arith.constant 0 : index
    %1 = vector.load %arg2[%c0_1, %c0_2, %c0_3] : memref<4x256x64xbf16, #tpu.memory_space<vmem>>, vector<1x256x64xbf16>
    %2 = vector.shape_cast %1 : vector<1x256x64xbf16> to vector<256x64xbf16>
    %cst = arith.constant dense<0.000000e+00> : vector<2x64xf32>
    %3 = tpu.matmul %0, %2, %cst {dimension_numbers = #tpu.dot_dimension_numbers<[1], [0], [0], [1], [0, 0, 1, 1], [], []>} : vector<2x256xbf16>, vector<256x64xbf16>, vector<2x64xf32> -> vector<2x64xf32>
    %c1 = arith.constant 1 : index
    %c0_4 = arith.constant 0 : index
    %c0_5 = arith.constant 0 : index
    %4 = vector.load %arg2[%c1, %c0_4, %c0_5] : memref<4x256x64xbf16, #tpu.memory_space<vmem>>, vector<1x256x64xbf16>
    %5 = vector.shape_cast %4 : vector<1x256x64xbf16> to vector<256x64xbf16>
    %cst_6 = arith.constant dense<0.000000e+00> : vector<2x64xf32>
    %6 = tpu.matmul %0, %5, %cst_6 {dimension_numbers = #tpu.dot_dimension_numbers<[1], [0], [0], [1], [0, 0, 1, 1], [], []>} : vector<2x256xbf16>, vector<256x64xbf16>, vector<2x64xf32> -> vector<2x64xf32>
    %c2 = arith.constant 2 : index
    %c0_7 = arith.constant 0 : index
    %c0_8 = arith.constant 0 : index
    %7 = vector.load %arg2[%c2, %c0_7, %c0_8] : memref<4x256x64xbf16, #tpu.memory_space<vmem>>, vector<1x256x64xbf16>
    %8 = vector.shape_cast %7 : vector<1x256x64xbf16> to vector<256x64xbf16>
    %cst_9 = arith.constant dense<0.000000e+00> : vector<2x64xf32>
    %9 = tpu.matmul %0, %8, %cst_9 {dimension_numbers = #tpu.dot_dimension_numbers<[1], [0], [0], [1], [0, 0, 1, 1], [], []>} : vector<2x256xbf16>, vector<256x64xbf16>, vector<2x64xf32> -> vector<2x64xf32>
    %c3 = arith.constant 3 : index
    %c0_10 = arith.constant 0 : index
    %c0_11 = arith.constant 0 : index
    %10 = vector.load %arg2[%c3, %c0_10, %c0_11] : memref<4x256x64xbf16, #tpu.memory_space<vmem>>, vector<1x256x64xbf16>
    %11 = vector.shape_cast %10 : vector<1x256x64xbf16> to vector<256x64xbf16>
    %cst_12 = arith.constant dense<0.000000e+00> : vector<2x64xf32>
    %12 = tpu.matmul %0, %11, %cst_12 {dimension_numbers = #tpu.dot_dimension_numbers<[1], [0], [0], [1], [0, 0, 1, 1], [], []>} : vector<2x256xbf16>, vector<256x64xbf16>, vector<2x64xf32> -> vector<2x64xf32>
    %13 = arith.maximumf %3, %6 : vector<2x64xf32>
    %14 = arith.maximumf %9, %12 : vector<2x64xf32>
    %15 = arith.maximumf %13, %14 : vector<2x64xf32>
    %c0_13 = arith.constant 0 : index
    %c0_14 = arith.constant 0 : index
    %16 = vector.load %arg3[%c0_13, %c0_14] : memref<1x64xf32, #tpu.memory_space<vmem>>, vector<1x64xf32>
    %17 = vector.broadcast %16 : vector<1x64xf32> to vector<2x64xf32>
    %18 = arith.addf %15, %17 : vector<2x64xf32>
    %cst_15 = arith.constant 0.000000e+00 : f32
    %19 = vector.broadcast %cst_15 : f32 to vector<2x64xf32>
    %20 = arith.maximumf %18, %19 : vector<2x64xf32>
    %21 = arith.truncf %20 : vector<2x64xf32> to vector<2x64xbf16>
    %c0_16 = arith.constant 0 : index
    %c0_17 = arith.constant 0 : index
    %22 = vector.load %arg4[%c0_16, %c0_17] : memref<64x512xbf16, #tpu.memory_space<vmem>>, vector<64x512xbf16>
    %cst_18 = arith.constant dense<0.000000e+00> : vector<2x512xf32>
    %23 = tpu.matmul %21, %22, %cst_18 {dimension_numbers = #tpu.dot_dimension_numbers<[1], [0], [0], [1], [0, 0, 1, 1], [], []>} : vector<2x64xbf16>, vector<64x512xbf16>, vector<2x512xf32> -> vector<2x512xf32>
    %c0_19 = arith.constant 0 : index
    %c0_20 = arith.constant 0 : index
    %24 = vector.load %arg5[%c0_19, %c0_20] : memref<1x512xf32, #tpu.memory_space<vmem>>, vector<1x512xf32>
    %25 = vector.broadcast %24 : vector<1x512xf32> to vector<2x512xf32>
    %26 = arith.addf %23, %25 : vector<2x512xf32>
    %cst_21 = arith.constant 0.000000e+00 : f32
    %27 = vector.broadcast %cst_21 : f32 to vector<2x512xf32>
    %28 = arith.maximumf %26, %27 : vector<2x512xf32>
    %29 = arith.truncf %28 : vector<2x512xf32> to vector<2x512xbf16>
    %c0_22 = arith.constant 0 : index
    %c0_23 = arith.constant 0 : index
    %30 = vector.load %arg6[%c0_22, %c0_23] : memref<512x6xbf16, #tpu.memory_space<vmem>>, vector<512x6xbf16>
    %cst_24 = arith.constant dense<0.000000e+00> : vector<2x6xf32>
    %31 = tpu.matmul %29, %30, %cst_24 {dimension_numbers = #tpu.dot_dimension_numbers<[1], [0], [0], [1], [0, 0, 1, 1], [], []>} : vector<2x512xbf16>, vector<512x6xbf16>, vector<2x6xf32> -> vector<2x6xf32>
    %c0_25 = arith.constant 0 : index
    %c0_26 = arith.constant 0 : index
    %32 = vector.load %arg7[%c0_25, %c0_26] : memref<1x6xf32, #tpu.memory_space<vmem>>, vector<1x6xf32>
    %33 = vector.broadcast %32 : vector<1x6xf32> to vector<2x6xf32>
    %34 = arith.addf %31, %33 : vector<2x6xf32>
    %c0_27 = arith.constant 0 : index
    %c0_28 = arith.constant 0 : index
    %35 = vector.load %arg8[%c0_27, %c0_28] : memref<2x6xf32, #tpu.memory_space<vmem>>, vector<2x6xf32>
    tpu.vector_store %arg8[%c0_27, %c0_28], %34 {strides = array<i32>} : memref<2x6xf32, #tpu.memory_space<vmem>>, vector<2x6xf32>,
    return
  }
  func.func @transform_0(%arg0: i32) -> (i32, i32) {
    %c0_i32 = arith.constant 0 : i32
    %c0_i32_0 = arith.constant 0 : i32
    return %arg0, %c0_i32 : i32, i32
  }
  func.func @transform_1(%arg0: i32) -> (i32, i32, i32) {
    %c0_i32 = arith.constant 0 : i32
    %c0_i32_0 = arith.constant 0 : i32
    %c0_i32_1 = arith.constant 0 : i32
    %c0_i32_2 = arith.constant 0 : i32
    return %c0_i32, %c0_i32_0, %c0_i32_1 : i32, i32, i32
  }
  func.func @transform_2(%arg0: i32) -> (i32, i32) {
    %c0_i32 = arith.constant 0 : i32
    %c0_i32_0 = arith.constant 0 : i32
    %c0_i32_1 = arith.constant 0 : i32
    return %c0_i32, %c0_i32_0 : i32, i32
  }
  func.func @transform_3(%arg0: i32) -> (i32, i32) {
    %c0_i32 = arith.constant 0 : i32
    %c0_i32_0 = arith.constant 0 : i32
    %c0_i32_1 = arith.constant 0 : i32
    return %c0_i32, %c0_i32_0 : i32, i32
  }
  func.func @transform_4(%arg0: i32) -> (i32, i32) {
    %c0_i32 = arith.constant 0 : i32
    %c0_i32_0 = arith.constant 0 : i32
    %c0_i32_1 = arith.constant 0 : i32
    return %c0_i32, %c0_i32_0 : i32, i32
  }
  func.func @transform_5(%arg0: i32) -> (i32, i32) {
    %c0_i32 = arith.constant 0 : i32
    %c0_i32_0 = arith.constant 0 : i32
    %c0_i32_1 = arith.constant 0 : i32
    return %c0_i32, %c0_i32_0 : i32, i32
  }
  func.func @transform_6(%arg0: i32) -> (i32, i32) {
    %c0_i32 = arith.constant 0 : i32
    %c0_i32_0 = arith.constant 0 : i32
    %c0_i32_1 = arith.constant 0 : i32
    return %c0_i32, %c0_i32_0 : i32, i32
  }
  func.func @transform_7(%arg0: i32) -> (i32, i32) {
    %c0_i32 = arith.constant 0 : i32
    %c0_i32_0 = arith.constant 0 : i32
    return %arg0, %c0_i32 : i32, i32
  }
}

</mosaic_0001>

<llo_original>
// kernel: neural_network_forward.3
$region0: #{neural_network_forward.3}
  #allocation0 [shape = 'u32[]', space=smem, size = 0x4, offset = 0x4, fixed_abs, tag = 'smem constant byte address 0x4 - core index']
  #allocation1 [shape = 'u32[72,128]{1,0:T(1,128)}', space=vmem, size = 0x9000, scoped, tag = 'internal scratch']
  %s0 = inlined_call_operand.vmem [shape: bf16[4,128,256], index: 0, kind: input, shape index: {}]
  %s1 = inlined_call_operand.vmem [shape: bf16[256,32], index: 1, kind: input, shape index: {}]
  %s2 = inlined_call_operand.vmem [shape: f32[1,32], index: 2, kind: input, shape index: {}]
  %s3 = inlined_call_operand.vmem [shape: f32[128,32], index: 3, kind: output, shape index: {}]
  %s4 = sld [smem:[#allocation0]]
  $region22: #{neural_network_forward.3} parent=0
    _
  %s6 = ssub.s32 1, %s4
  %s7 = scalar_select 0, %s6, %s4
  // Predicated region
  $region2: #{neural_network_forward.3} parent=0 // pred_check
    _
  $region3: #{neural_network_forward.3} parent=0 // pred_check_branch
    %9 = sbr.rel (0) target = $region5
  $region4: #{neural_network_forward.3} parent=0 // pred_region
    _
  $region5: #{neural_network_forward.3} parent=0 // pred_fallthru
    _
  // Predicated region
  $region6: #{neural_network_forward.3} parent=0 // pred_check
    _
  $region7: #{neural_network_forward.3} parent=0 // pred_check_branch
    %11 = sbr.rel (0) target = $region9
  $region8: #{neural_network_forward.3} parent=0 // pred_region
    _
  $region9: #{neural_network_forward.3} parent=0 // pred_fallthru
    _
  // Predicated region
  $region10: #{neural_network_forward.3} parent=0 // pred_check
    _
  $region11: #{neural_network_forward.3} parent=0 // pred_check_branch
    %13 = sbr.rel (0) target = $region13
  $region12: #{neural_network_forward.3} parent=0 // pred_region
    _
  $region13: #{neural_network_forward.3} parent=0 // pred_fallthru
    _
  %v14 = vld [vmem:[%s1] sm:$0xf]
  %v15 = vld [vmem:[%s1 + $0x4] sm:$0xf]
  %v16 = vld [vmem:[%s1 + $0x8] sm:$0xf]
  %v17 = vld [vmem:[%s1 + $0xc] sm:$0xf]
  %v18 = vld [vmem:[%s1 + $0x10] sm:$0xf]
  %v19 = vld [vmem:[%s1 + $0x14] sm:$0xf]
  %v20 = vld [vmem:[%s1 + $0x18] sm:$0xf]
  %v21 = vld [vmem:[%s1 + $0x1c] sm:$0xf]
  %v22 = vld [vmem:[%s1 + $0x20] sm:$0xf]
  %v23 = vld [vmem:[%s1 + $0x24] sm:$0xf]
  %v24 = vld [vmem:[%s1 + $0x28] sm:$0xf]
  %v25 = vld [vmem:[%s1 + $0x2c] sm:$0xf]
  %v26 = vld [vmem:[%s1 + $0x30] sm:$0xf]
  %v27 = vld [vmem:[%s1 + $0x34] sm:$0xf]
  %v28 = vld [vmem:[%s1 + $0x38] sm:$0xf]
  %v29 = vld [vmem:[%s1 + $0x3c] sm:$0xf]
  %v30 = vld [vmem:[%s1 + $0x40] sm:$0xf]
  %v31 = vld [vmem:[%s1 + $0x44] sm:$0xf]
  %v32 = vld [vmem:[%s1 + $0x48] sm:$0xf]
  %v33 = vld [vmem:[%s1 + $0x4c] sm:$0xf]
  %v34 = vld [vmem:[%s1 + $0x50] sm:$0xf]
  %v35 = vld [vmem:[%s1 + $0x54] sm:$0xf]
  %v36 = vld [vmem:[%s1 + $0x58] sm:$0xf]
  %v37 = vld [vmem:[%s1 + $0x5c] sm:$0xf]
  %v38 = vld [vmem:[%s1 + $0x60] sm:$0xf]
  %v39 = vld [vmem:[%s1 + $0x64] sm:$0xf]
  %v40 = vld [vmem:[%s1 + $0x68] sm:$0xf]
  %v41 = vld [vmem:[%s1 + $0x6c] sm:$0xf]
  %v42 = vld [vmem:[%s1 + $0x70] sm:$0xf]
  %v43 = vld [vmem:[%s1 + $0x74] sm:$0xf]
  %v44 = vld [vmem:[%s1 + $0x78] sm:$0xf]
  %v45 = vld [vmem:[%s1 + $0x7c] sm:$0xf]
  %v46 = vld [vmem:[%s0] sm:$0xff]
  %v47 = vld [vmem:[%s0 + $0x8] sm:$0xff]
  %v48 = vld [vmem:[%s0 + $0x10] sm:$0xff]
  %v49 = vld [vmem:[%s0 + $0x18] sm:$0xff]
  %v50 = vld [vmem:[%s0 + $0x20] sm:$0xff]
  %v51 = vld [vmem:[%s0 + $0x28] sm:$0xff]
  %v52 = vld [vmem:[%s0 + $0x30] sm:$0xff]
  %v53 = vld [vmem:[%s0 + $0x38] sm:$0xff]
  %v54 = vld [vmem:[%s0 + $0x40] sm:$0xff]
  %v55 = vld [vmem:[%s0 + $0x48] sm:$0xff]
  %v56 = vld [vmem:[%s0 + $0x50] sm:$0xff]
  %v57 = vld [vmem:[%s0 + $0x58] sm:$0xff]
  %v58 = vld [vmem:[%s0 + $0x60] sm:$0xff]
  %v59 = vld [vmem:[%s0 + $0x68] sm:$0xff]
  %v60 = vld [vmem:[%s0 + $0x70] sm:$0xff]
  %v61 = vld [vmem:[%s0 + $0x78] sm:$0xff]
  %v78 = vunpack.c.l.b16 %v46
  %v79 = vunpack.c.h.b16 %v46
  %v80 = vunpack.c.l.b16 %v47
  %v81 = vunpack.c.h.b16 %v47
  %v82 = vunpack.c.l.b16 %v48
  %v83 = vunpack.c.h.b16 %v48
  %v84 = vunpack.c.l.b16 %v49
  %v85 = vunpack.c.h.b16 %v49
  %v86 = vunpack.c.l.b16 %v50
  %v87 = vunpack.c.h.b16 %v50
  %v88 = vunpack.c.l.b16 %v51
  %v89 = vunpack.c.h.b16 %v51
  %v90 = vunpack.c.l.b16 %v52
  %v91 = vunpack.c.h.b16 %v52
  %v92 = vunpack.c.l.b16 %v53
  %v93 = vunpack.c.h.b16 %v53
  %v94 = vunpack.c.l.b16 %v54
  %v95 = vunpack.c.h.b16 %v54
  %v96 = vunpack.c.l.b16 %v55
  %v97 = vunpack.c.h.b16 %v55
  %v98 = vunpack.c.l.b16 %v56
  %v99 = vunpack.c.h.b16 %v56
  %v100 = vunpack.c.l.b16 %v57
  %v101 = vunpack.c.h.b16 %v57
  %v102 = vunpack.c.l.b16 %v58
  %v103 = vunpack.c.h.b16 %v58
  %v104 = vunpack.c.l.b16 %v59
  %v105 = vunpack.c.h.b16 %v59
  %v106 = vunpack.c.l.b16 %v60
  %v107 = vunpack.c.h.b16 %v60
  %v108 = vunpack.c.l.b16 %v61
  %v109 = vunpack.c.h.b16 %v61
  %v110 = vpack.c.b16 %v80, %v78
  %v111 = vpack.c.b16 %v81, %v79
  %v112 = vpack.c.b16 %v84, %v82
  %v113 = vpack.c.b16 %v85, %v83
  %v114 = vpack.c.b16 %v88, %v86
  %v115 = vpack.c.b16 %v89, %v87
  %v116 = vpack.c.b16 %v92, %v90
  %v117 = vpack.c.b16 %v93, %v91
  %v118 = vpack.c.b16 %v96, %v94
  %v119 = vpack.c.b16 %v97, %v95
  %v120 = vpack.c.b16 %v100, %v98
  %v121 = vpack.c.b16 %v101, %v99
  %v122 = vpack.c.b16 %v104, %v102
  %v123 = vpack.c.b16 %v105, %v103
  %v124 = vpack.c.b16 %v108, %v106
  %v125 = vpack.c.b16 %v109, %v107
  %v174 = vunpack.c.l.b16 %v14
  %v175 = vunpack.c.l.b16 %v15
  %v176 = vunpack.c.l.b16 %v16
  %v177 = vunpack.c.l.b16 %v17
  %v178 = vunpack.c.l.b16 %v18
  %v179 = vunpack.c.l.b16 %v19
  %v180 = vunpack.c.l.b16 %v20
  %v181 = vunpack.c.l.b16 %v21
  %v182 = vunpack.c.l.b16 %v22
  %v183 = vunpack.c.l.b16 %v23
  %v184 = vunpack.c.l.b16 %v24
  %v185 = vunpack.c.l.b16 %v25
  %v186 = vunpack.c.l.b16 %v26
  %v187 = vunpack.c.l.b16 %v27
  %v188 = vunpack.c.l.b16 %v28
  %v189 = vunpack.c.l.b16 %v29
  %v190 = vunpack.c.l.b16 %v30
  %v191 = vunpack.c.l.b16 %v31
  %v192 = vunpack.c.l.b16 %v32
  %v193 = vunpack.c.l.b16 %v33
  %v194 = vunpack.c.l.b16 %v34
  %v195 = vunpack.c.l.b16 %v35
  %v196 = vunpack.c.l.b16 %v36
  %v197 = vunpack.c.l.b16 %v37
  %v198 = vunpack.c.l.b16 %v38
  %v199 = vunpack.c.l.b16 %v39
  %v200 = vunpack.c.l.b16 %v40
  %v201 = vunpack.c.l.b16 %v41
  %v202 = vunpack.c.l.b16 %v42
  %v203 = vunpack.c.l.b16 %v43
  %v204 = vunpack.c.l.b16 %v44
  %v205 = vunpack.c.l.b16 %v45
  %v206 = vpack.c.b16 %v175, %v174
  %v207 = vpack.c.b16 %v177, %v176
  %v208 = vpack.c.b16 %v179, %v178
  %v209 = vpack.c.b16 %v181, %v180
  %v210 = vpack.c.b16 %v183, %v182
  %v211 = vpack.c.b16 %v185, %v184
  %v212 = vpack.c.b16 %v187, %v186
  %v213 = vpack.c.b16 %v189, %v188
  %v214 = vpack.c.b16 %v191, %v190
  %v215 = vpack.c.b16 %v193, %v192
  %v216 = vpack.c.b16 %v195, %v194
  %v217 = vpack.c.b16 %v197, %v196
  %v218 = vpack.c.b16 %v199, %v198
  %v219 = vpack.c.b16 %v201, %v200
  %v220 = vpack.c.b16 %v203, %v202
  %v221 = vpack.c.b16 %v205, %v204
  %238 = vmatpush.bf16.msra.mxu0 %v213
  %239 = vmatpush.bf16.msra.mxu0 %v212
  %240 = vmatpush.bf16.msra.mxu0 %v211
  %241 = vmatpush.bf16.msra.mxu0 %v210
  %242 = vmatpush.bf16.msra.mxu0 %v209
  %243 = vmatpush.bf16.msra.mxu0 %v208
  %244 = vmatpush.bf16.msra.mxu0 %v207
  %245 = vmatpush.bf16.msra.mxu0 %v206
  %246 = vmatmul.bf16.gmra.mxu0 %v110
  %v247 = vpop.f32.mrf.mxu0
  %v248 = vadd.f32 0.0, %v247
  %v249 = vpop.f32.mrf.mxu0
  %v250 = vadd.f32 0.0, %v249
  %251 = vmatmul.bf16.gmra.mxu0 %v112
  %v252 = vpop.f32.mrf.mxu0
  %v253 = vadd.f32 0.0, %v252
  %v254 = vpop.f32.mrf.mxu0
  %v255 = vadd.f32 0.0, %v254
  %256 = vmatmul.bf16.gmra.mxu0 %v114
  %v257 = vpop.f32.mrf.mxu0
  %v258 = vadd.f32 0.0, %v257
  %v259 = vpop.f32.mrf.mxu0
  %v260 = vadd.f32 0.0, %v259
  %261 = vmatmul.bf16.gmra.mxu0 %v116
  %v262 = vpop.f32.mrf.mxu0
  %v263 = vadd.f32 0.0, %v262
  %v264 = vpop.f32.mrf.mxu0
  %v265 = vadd.f32 0.0, %v264
  %266 = vmatmul.bf16.gmra.mxu0 %v118
  %v267 = vpop.f32.mrf.mxu0
  %v268 = vadd.f32 0.0, %v267
  %v269 = vpop.f32.mrf.mxu0
  %v270 = vadd.f32 0.0, %v269
  %271 = vmatmul.bf16.gmra.mxu0 %v120
  %v272 = vpop.f32.mrf.mxu0
  %v273 = vadd.f32 0.0, %v272
  %v274 = vpop.f32.mrf.mxu0
  %v275 = vadd.f32 0.0, %v274
  %276 = vmatmul.bf16.gmra.mxu0 %v122
  %v277 = vpop.f32.mrf.mxu0
  %v278 = vadd.f32 0.0, %v277
  %v279 = vpop.f32.mrf.mxu0
  %v280 = vadd.f32 0.0, %v279
  %281 = vmatmul.bf16.gmra.mxu0 %v124
  %v282 = vpop.f32.mrf.mxu0
  %v283 = vadd.f32 0.0, %v282
  %v284 = vpop.f32.mrf.mxu0
  %v285 = vadd.f32 0.0, %v284
  %286 = vdwg.mxu0
  %287 = vmatpush.bf16.msra.mxu0 %v221
  %288 = vmatpush.bf16.msra.mxu0 %v220
  %289 = vmatpush.bf16.msra.mxu0 %v219
  %290 = vmatpush.bf16.msra.mxu0 %v218
  %291 = vmatpush.bf16.msra.mxu0 %v217
  %292 = vmatpush.bf16.msra.mxu0 %v216
  %293 = vmatpush.bf16.msra.mxu0 %v215
  %294 = vmatpush.bf16.msra.mxu0 %v214
  %295 = vmatmul.bf16.gmra.mxu0 %v111
  %v296 = vpop.f32.mrf.mxu0
  %v297 = vadd.f32 %v248, %v296
  %v298 = vpop.f32.mrf.mxu0
  %v299 = vadd.f32 %v250, %v298
  %300 = vmatmul.bf16.gmra.mxu0 %v113
  %v301 = vpop.f32.mrf.mxu0
  %v302 = vadd.f32 %v253, %v301
  %v303 = vpop.f32.mrf.mxu0
  %v304 = vadd.f32 %v255, %v303
  %305 = vmatmul.bf16.gmra.mxu0 %v115
  %v306 = vpop.f32.mrf.mxu0
  %v307 = vadd.f32 %v258, %v306
  %v308 = vpop.f32.mrf.mxu0
  %v309 = vadd.f32 %v260, %v308
  %310 = vmatmul.bf16.gmra.mxu0 %v117
  %v311 = vpop.f32.mrf.mxu0
  %v312 = vadd.f32 %v263, %v311
  %v313 = vpop.f32.mrf.mxu0
  %v314 = vadd.f32 %v265, %v313
  %315 = vmatmul.bf16.gmra.mxu0 %v119
  %v316 = vpop.f32.mrf.mxu0
  %v317 = vadd.f32 %v268, %v316
  %v318 = vpop.f32.mrf.mxu0
  %v319 = vadd.f32 %v270, %v318
  %320 = vmatmul.bf16.gmra.mxu0 %v121
  %v321 = vpop.f32.mrf.mxu0
  %v322 = vadd.f32 %v273, %v321
  %v323 = vpop.f32.mrf.mxu0
  %v324 = vadd.f32 %v275, %v323
  %325 = vmatmul.bf16.gmra.mxu0 %v123
  %v326 = vpop.f32.mrf.mxu0
  %v327 = vadd.f32 %v278, %v326
  %v328 = vpop.f32.mrf.mxu0
  %v329 = vadd.f32 %v280, %v328
  %330 = vmatmul.bf16.gmra.mxu0 %v125
  %v331 = vpop.f32.mrf.mxu0
  %v332 = vadd.f32 %v283, %v331
  %v333 = vpop.f32.mrf.mxu0
  %v334 = vadd.f32 %v285, %v333
  %335 = vdwg.mxu0
  %s336 = scalar_lea.vmem %s0, 128
  %v337 = vld [vmem:[%s336] sm:$0xff]
  %v338 = vld [vmem:[%s336 + $0x8] sm:$0xff]
  %v339 = vld [vmem:[%s336 + $0x10] sm:$0xff]
  %v340 = vld [vmem:[%s336 + $0x18] sm:$0xff]
  %v341 = vld [vmem:[%s336 + $0x20] sm:$0xff]
  %v342 = vld [vmem:[%s336 + $0x28] sm:$0xff]
  %v343 = vld [vmem:[%s336 + $0x30] sm:$0xff]
  %v344 = vld [vmem:[%s336 + $0x38] sm:$0xff]
  %v345 = vld [vmem:[%s336 + $0x40] sm:$0xff]
  %v346 = vld [vmem:[%s336 + $0x48] sm:$0xff]
  %v347 = vld [vmem:[%s336 + $0x50] sm:$0xff]
  %v348 = vld [vmem:[%s336 + $0x58] sm:$0xff]
  %v349 = vld [vmem:[%s336 + $0x60] sm:$0xff]
  %v350 = vld [vmem:[%s336 + $0x68] sm:$0xff]
  %v351 = vld [vmem:[%s336 + $0x70] sm:$0xff]
  %v352 = vld [vmem:[%s336 + $0x78] sm:$0xff]
  %v369 = vunpack.c.l.b16 %v337
  %v370 = vunpack.c.h.b16 %v337
  %v371 = vunpack.c.l.b16 %v338
  %v372 = vunpack.c.h.b16 %v338
  %v373 = vunpack.c.l.b16 %v339
  %v374 = vunpack.c.h.b16 %v339
  %v375 = vunpack.c.l.b16 %v340
  %v376 = vunpack.c.h.b16 %v340
  %v377 = vunpack.c.l.b16 %v341
  %v378 = vunpack.c.h.b16 %v341
  %v379 = vunpack.c.l.b16 %v342
  %v380 = vunpack.c.h.b16 %v342
  %v381 = vunpack.c.l.b16 %v343
  %v382 = vunpack.c.h.b16 %v343
  %v383 = vunpack.c.l.b16 %v344
  %v384 = vunpack.c.h.b16 %v344
  %v385 = vunpack.c.l.b16 %v345
  %v386 = vunpack.c.h.b16 %v345
  %v387 = vunpack.c.l.b16 %v346
  %v388 = vunpack.c.h.b16 %v346
  %v389 = vunpack.c.l.b16 %v347
  %v390 = vunpack.c.h.b16 %v347
  %v391 = vunpack.c.l.b16 %v348
  %v392 = vunpack.c.h.b16 %v348
  %v393 = vunpack.c.l.b16 %v349
  %v394 = vunpack.c.h.b16 %v349
  %v395 = vunpack.c.l.b16 %v350
  %v396 = vunpack.c.h.b16 %v350
  %v397 = vunpack.c.l.b16 %v351
  %v398 = vunpack.c.h.b16 %v351
  %v399 = vunpack.c.l.b16 %v352
  %v400 = vunpack.c.h.b16 %v352
  %v401 = vpack.c.b16 %v371, %v369
  %v402 = vpack.c.b16 %v372, %v370
  %v403 = vpack.c.b16 %v375, %v373
  %v404 = vpack.c.b16 %v376, %v374
  %v405 = vpack.c.b16 %v379, %v377
  %v406 = vpack.c.b16 %v380, %v378
  %v407 = vpack.c.b16 %v383, %v381
  %v408 = vpack.c.b16 %v384, %v382
  %v409 = vpack.c.b16 %v387, %v385
  %v410 = vpack.c.b16 %v388, %v386
  %v411 = vpack.c.b16 %v391, %v389
  %v412 = vpack.c.b16 %v392, %v390
  %v413 = vpack.c.b16 %v395, %v393
  %v414 = vpack.c.b16 %v396, %v394
  %v415 = vpack.c.b16 %v399, %v397
  %v416 = vpack.c.b16 %v400, %v398
  %433 = vmatpush.bf16.msra.mxu0 %v213
  %434 = vmatpush.bf16.msra.mxu0 %v212
  %435 = vmatpush.bf16.msra.mxu0 %v211
  %436 = vmatpush.bf16.msra.mxu0 %v210
  %437 = vmatpush.bf16.msra.mxu0 %v209
  %438 = vmatpush.bf16.msra.mxu0 %v208
  %439 = vmatpush.bf16.msra.mxu0 %v207
  %440 = vmatpush.bf16.msra.mxu0 %v206
  %441 = vmatmul.bf16.gmra.mxu0 %v401
  %v442 = vpop.f32.mrf.mxu0
  %v443 = vadd.f32 0.0, %v442
  %v444 = vpop.f32.mrf.mxu0
  %v445 = vadd.f32 0.0, %v444
  %446 = vmatmul.bf16.gmra.mxu0 %v403
  %v447 = vpop.f32.mrf.mxu0
  %v448 = vadd.f32 0.0, %v447
  %v449 = vpop.f32.mrf.mxu0
  %v450 = vadd.f32 0.0, %v449
  %451 = vmatmul.bf16.gmra.mxu0 %v405
  %v452 = vpop.f32.mrf.mxu0
  %v453 = vadd.f32 0.0, %v452
  %v454 = vpop.f32.mrf.mxu0
  %v455 = vadd.f32 0.0, %v454
  %456 = vmatmul.bf16.gmra.mxu0 %v407
  %v457 = vpop.f32.mrf.mxu0
  %v458 = vadd.f32 0.0, %v457
  %v459 = vpop.f32.mrf.mxu0
  %v460 = vadd.f32 0.0, %v459
  %461 = vmatmul.bf16.gmra.mxu0 %v409
  %v462 = vpop.f32.mrf.mxu0
  %v463 = vadd.f32 0.0, %v462
  %v464 = vpop.f32.mrf.mxu0
  %v465 = vadd.f32 0.0, %v464
  %466 = vmatmul.bf16.gmra.mxu0 %v411
  %v467 = vpop.f32.mrf.mxu0
  %v468 = vadd.f32 0.0, %v467
  %v469 = vpop.f32.mrf.mxu0
  %v470 = vadd.f32 0.0, %v469
  %471 = vmatmul.bf16.gmra.mxu0 %v413
  %v472 = vpop.f32.mrf.mxu0
  %v473 = vadd.f32 0.0, %v472
  %v474 = vpop.f32.mrf.mxu0
  %v475 = vadd.f32 0.0, %v474
  %476 = vmatmul.bf16.gmra.mxu0 %v415
  %v477 = vpop.f32.mrf.mxu0
  %v478 = vadd.f32 0.0, %v477
  %v479 = vpop.f32.mrf.mxu0
  %v480 = vadd.f32 0.0, %v479
  %481 = vdwg.mxu0
  %482 = vmatpush.bf16.msra.mxu0 %v221
  %483 = vmatpush.bf16.msra.mxu0 %v220
  %484 = vmatpush.bf16.msra.mxu0 %v219
  %485 = vmatpush.bf16.msra.mxu0 %v218
  %486 = vmatpush.bf16.msra.mxu0 %v217
  %487 = vmatpush.bf16.msra.mxu0 %v216
  %488 = vmatpush.bf16.msra.mxu0 %v215
  %489 = vmatpush.bf16.msra.mxu0 %v214
  %490 = vmatmul.bf16.gmra.mxu0 %v402
  %v491 = vpop.f32.mrf.mxu0
  %v492 = vadd.f32 %v443, %v491
  %v493 = vpop.f32.mrf.mxu0
  %v494 = vadd.f32 %v445, %v493
  %495 = vmatmul.bf16.gmra.mxu0 %v404
  %v496 = vpop.f32.mrf.mxu0
  %v497 = vadd.f32 %v448, %v496
  %v498 = vpop.f32.mrf.mxu0
  %v499 = vadd.f32 %v450, %v498
  %500 = vmatmul.bf16.gmra.mxu0 %v406
  %v501 = vpop.f32.mrf.mxu0
  %v502 = vadd.f32 %v453, %v501
  %v503 = vpop.f32.mrf.mxu0
  %v504 = vadd.f32 %v455, %v503
  %505 = vmatmul.bf16.gmra.mxu0 %v408
  %v506 = vpop.f32.mrf.mxu0
  %v507 = vadd.f32 %v458, %v506
  %v508 = vpop.f32.mrf.mxu0
  %v509 = vadd.f32 %v460, %v508
  %510 = vmatmul.bf16.gmra.mxu0 %v410
  %v511 = vpop.f32.mrf.mxu0
  %v512 = vadd.f32 %v463, %v511
  %v513 = vpop.f32.mrf.mxu0
  %v514 = vadd.f32 %v465, %v513
  %515 = vmatmul.bf16.gmra.mxu0 %v412
  %v516 = vpop.f32.mrf.mxu0
  %v517 = vadd.f32 %v468, %v516
  %v518 = vpop.f32.mrf.mxu0
  %v519 = vadd.f32 %v470, %v518
  %520 = vmatmul.bf16.gmra.mxu0 %v414
  %v521 = vpop.f32.mrf.mxu0
  %v522 = vadd.f32 %v473, %v521
  %v523 = vpop.f32.mrf.mxu0
  %v524 = vadd.f32 %v475, %v523
  %525 = vmatmul.bf16.gmra.mxu0 %v416
  %v526 = vpop.f32.mrf.mxu0
  %v527 = vadd.f32 %v478, %v526
  %v528 = vpop.f32.mrf.mxu0
  %v529 = vadd.f32 %v480, %v528
  %530 = vdwg.mxu0
  %s531 = scalar_lea.vmem %s0, 256
  %v532 = vld [vmem:[%s531] sm:$0xff]
  %v533 = vld [vmem:[%s531 + $0x8] sm:$0xff]
  %v534 = vld [vmem:[%s531 + $0x10] sm:$0xff]
  %v535 = vld [vmem:[%s531 + $0x18] sm:$0xff]
  %v536 = vld [vmem:[%s531 + $0x20] sm:$0xff]
  %v537 = vld [vmem:[%s531 + $0x28] sm:$0xff]
  %v538 = vld [vmem:[%s531 + $0x30] sm:$0xff]
  %v539 = vld [vmem:[%s531 + $0x38] sm:$0xff]
  %v540 = vld [vmem:[%s531 + $0x40] sm:$0xff]
  %v541 = vld [vmem:[%s531 + $0x48] sm:$0xff]
  %v542 = vld [vmem:[%s531 + $0x50] sm:$0xff]
  %v543 = vld [vmem:[%s531 + $0x58] sm:$0xff]
  %v544 = vld [vmem:[%s531 + $0x60] sm:$0xff]
  %v545 = vld [vmem:[%s531 + $0x68] sm:$0xff]
  %v546 = vld [vmem:[%s531 + $0x70] sm:$0xff]
  %v547 = vld [vmem:[%s531 + $0x78] sm:$0xff]
  %v564 = vunpack.c.l.b16 %v532
  %v565 = vunpack.c.h.b16 %v532
  %v566 = vunpack.c.l.b16 %v533
  %v567 = vunpack.c.h.b16 %v533
  %v568 = vunpack.c.l.b16 %v534
  %v569 = vunpack.c.h.b16 %v534
  %v570 = vunpack.c.l.b16 %v535
  %v571 = vunpack.c.h.b16 %v535
  %v572 = vunpack.c.l.b16 %v536
  %v573 = vunpack.c.h.b16 %v536
  %v574 = vunpack.c.l.b16 %v537
  %v575 = vunpack.c.h.b16 %v537
  %v576 = vunpack.c.l.b16 %v538
  %v577 = vunpack.c.h.b16 %v538
  %v578 = vunpack.c.l.b16 %v539
  %v579 = vunpack.c.h.b16 %v539
  %v580 = vunpack.c.l.b16 %v540
  %v581 = vunpack.c.h.b16 %v540
  %v582 = vunpack.c.l.b16 %v541
  %v583 = vunpack.c.h.b16 %v541
  %v584 = vunpack.c.l.b16 %v542
  %v585 = vunpack.c.h.b16 %v542
  %v586 = vunpack.c.l.b16 %v543
  %v587 = vunpack.c.h.b16 %v543
  %v588 = vunpack.c.l.b16 %v544
  %v589 = vunpack.c.h.b16 %v544
  %v590 = vunpack.c.l.b16 %v545
  %v591 = vunpack.c.h.b16 %v545
  %v592 = vunpack.c.l.b16 %v546
  %v593 = vunpack.c.h.b16 %v546
  %v594 = vunpack.c.l.b16 %v547
  %v595 = vunpack.c.h.b16 %v547
  %v596 = vpack.c.b16 %v566, %v564
  %v597 = vpack.c.b16 %v567, %v565
  %v598 = vpack.c.b16 %v570, %v568
  %v599 = vpack.c.b16 %v571, %v569
  %v600 = vpack.c.b16 %v574, %v572
  %v601 = vpack.c.b16 %v575, %v573
  %v602 = vpack.c.b16 %v578, %v576
  %v603 = vpack.c.b16 %v579, %v577
  %v604 = vpack.c.b16 %v582, %v580
  %v605 = vpack.c.b16 %v583, %v581
  %v606 = vpack.c.b16 %v586, %v584
  %v607 = vpack.c.b16 %v587, %v585
  %v608 = vpack.c.b16 %v590, %v588
  %v609 = vpack.c.b16 %v591, %v589
  %v610 = vpack.c.b16 %v594, %v592
  %v611 = vpack.c.b16 %v595, %v593
  %628 = vmatpush.bf16.msra.mxu0 %v213
  %629 = vmatpush.bf16.msra.mxu0 %v212
  %630 = vmatpush.bf16.msra.mxu0 %v211
  %631 = vmatpush.bf16.msra.mxu0 %v210
  %632 = vmatpush.bf16.msra.mxu0 %v209
  %633 = vmatpush.bf16.msra.mxu0 %v208
  %634 = vmatpush.bf16.msra.mxu0 %v207
  %635 = vmatpush.bf16.msra.mxu0 %v206
  %636 = vmatmul.bf16.gmra.mxu0 %v596
  %v637 = vpop.f32.mrf.mxu0
  %v638 = vadd.f32 0.0, %v637
  %v639 = vpop.f32.mrf.mxu0
  %v640 = vadd.f32 0.0, %v639
  %641 = vmatmul.bf16.gmra.mxu0 %v598
  %v642 = vpop.f32.mrf.mxu0
  %v643 = vadd.f32 0.0, %v642
  %v644 = vpop.f32.mrf.mxu0
  %v645 = vadd.f32 0.0, %v644
  %646 = vmatmul.bf16.gmra.mxu0 %v600
  %v647 = vpop.f32.mrf.mxu0
  %v648 = vadd.f32 0.0, %v647
  %v649 = vpop.f32.mrf.mxu0
  %v650 = vadd.f32 0.0, %v649
  %651 = vmatmul.bf16.gmra.mxu0 %v602
  %v652 = vpop.f32.mrf.mxu0
  %v653 = vadd.f32 0.0, %v652
  %v654 = vpop.f32.mrf.mxu0
  %v655 = vadd.f32 0.0, %v654
  %656 = vmatmul.bf16.gmra.mxu0 %v604
  %v657 = vpop.f32.mrf.mxu0
  %v658 = vadd.f32 0.0, %v657
  %v659 = vpop.f32.mrf.mxu0
  %v660 = vadd.f32 0.0, %v659
  %661 = vmatmul.bf16.gmra.mxu0 %v606
  %v662 = vpop.f32.mrf.mxu0
  %v663 = vadd.f32 0.0, %v662
  %v664 = vpop.f32.mrf.mxu0
  %v665 = vadd.f32 0.0, %v664
  %666 = vmatmul.bf16.gmra.mxu0 %v608
  %v667 = vpop.f32.mrf.mxu0
  %v668 = vadd.f32 0.0, %v667
  %v669 = vpop.f32.mrf.mxu0
  %v670 = vadd.f32 0.0, %v669
  %671 = vmatmul.bf16.gmra.mxu0 %v610
  %v672 = vpop.f32.mrf.mxu0
  %v673 = vadd.f32 0.0, %v672
  %v674 = vpop.f32.mrf.mxu0
  %v675 = vadd.f32 0.0, %v674
  %676 = vdwg.mxu0
  %677 = vmatpush.bf16.msra.mxu0 %v221
  %678 = vmatpush.bf16.msra.mxu0 %v220
  %679 = vmatpush.bf16.msra.mxu0 %v219
  %680 = vmatpush.bf16.msra.mxu0 %v218
  %681 = vmatpush.bf16.msra.mxu0 %v217
  %682 = vmatpush.bf16.msra.mxu0 %v216
  %683 = vmatpush.bf16.msra.mxu0 %v215
  %684 = vmatpush.bf16.msra.mxu0 %v214
  %685 = vmatmul.bf16.gmra.mxu0 %v597
  %v686 = vpop.f32.mrf.mxu0
  %v687 = vadd.f32 %v638, %v686
  %v688 = vpop.f32.mrf.mxu0
  %v689 = vadd.f32 %v640, %v688
  %690 = vmatmul.bf16.gmra.mxu0 %v599
  %v691 = vpop.f32.mrf.mxu0
  %v692 = vadd.f32 %v643, %v691
  %v693 = vpop.f32.mrf.mxu0
  %v694 = vadd.f32 %v645, %v693
  %695 = vmatmul.bf16.gmra.mxu0 %v601
  %v696 = vpop.f32.mrf.mxu0
  %v697 = vadd.f32 %v648, %v696
  %v698 = vpop.f32.mrf.mxu0
  %v699 = vadd.f32 %v650, %v698
  %700 = vmatmul.bf16.gmra.mxu0 %v603
  %v701 = vpop.f32.mrf.mxu0
  %v702 = vadd.f32 %v653, %v701
  %v703 = vpop.f32.mrf.mxu0
  %v704 = vadd.f32 %v655, %v703
  %705 = vmatmul.bf16.gmra.mxu0 %v605
  %v706 = vpop.f32.mrf.mxu0
  %v707 = vadd.f32 %v658, %v706
  %v708 = vpop.f32.mrf.mxu0
  %v709 = vadd.f32 %v660, %v708
  %710 = vmatmul.bf16.gmra.mxu0 %v607
  %v711 = vpop.f32.mrf.mxu0
  %v712 = vadd.f32 %v663, %v711
  %v713 = vpop.f32.mrf.mxu0
  %v714 = vadd.f32 %v665, %v713
  %715 = vmatmul.bf16.gmra.mxu0 %v609
  %v716 = vpop.f32.mrf.mxu0
  %v717 = vadd.f32 %v668, %v716
  %v718 = vpop.f32.mrf.mxu0
  %v719 = vadd.f32 %v670, %v718
  %720 = vmatmul.bf16.gmra.mxu0 %v611
  %v721 = vpop.f32.mrf.mxu0
  %v722 = vadd.f32 %v673, %v721
  %v723 = vpop.f32.mrf.mxu0
  %v724 = vadd.f32 %v675, %v723
  %725 = vdwg.mxu0
  %s726 = scalar_lea.vmem %s0, 384
  %v727 = vld [vmem:[%s726] sm:$0xff]
  %v728 = vld [vmem:[%s726 + $0x8] sm:$0xff]
  %v729 = vld [vmem:[%s726 + $0x10] sm:$0xff]
  %v730 = vld [vmem:[%s726 + $0x18] sm:$0xff]
  %v731 = vld [vmem:[%s726 + $0x20] sm:$0xff]
  %v732 = vld [vmem:[%s726 + $0x28] sm:$0xff]
  %v733 = vld [vmem:[%s726 + $0x30] sm:$0xff]
  %v734 = vld [vmem:[%s726 + $0x38] sm:$0xff]
  %v735 = vld [vmem:[%s726 + $0x40] sm:$0xff]
  %v736 = vld [vmem:[%s726 + $0x48] sm:$0xff]
  %v737 = vld [vmem:[%s726 + $0x50] sm:$0xff]
  %v738 = vld [vmem:[%s726 + $0x58] sm:$0xff]
  %v739 = vld [vmem:[%s726 + $0x60] sm:$0xff]
  %v740 = vld [vmem:[%s726 + $0x68] sm:$0xff]
  %v741 = vld [vmem:[%s726 + $0x70] sm:$0xff]
  %v742 = vld [vmem:[%s726 + $0x78] sm:$0xff]
  %v759 = vunpack.c.l.b16 %v727
  %v760 = vunpack.c.h.b16 %v727
  %v761 = vunpack.c.l.b16 %v728
  %v762 = vunpack.c.h.b16 %v728
  %v763 = vunpack.c.l.b16 %v729
  %v764 = vunpack.c.h.b16 %v729
  %v765 = vunpack.c.l.b16 %v730
  %v766 = vunpack.c.h.b16 %v730
  %v767 = vunpack.c.l.b16 %v731
  %v768 = vunpack.c.h.b16 %v731
  %v769 = vunpack.c.l.b16 %v732
  %v770 = vunpack.c.h.b16 %v732
  %v771 = vunpack.c.l.b16 %v733
  %v772 = vunpack.c.h.b16 %v733
  %v773 = vunpack.c.l.b16 %v734
  %v774 = vunpack.c.h.b16 %v734
  %v775 = vunpack.c.l.b16 %v735
  %v776 = vunpack.c.h.b16 %v735
  %v777 = vunpack.c.l.b16 %v736
  %v778 = vunpack.c.h.b16 %v736
  %v779 = vunpack.c.l.b16 %v737
  %v780 = vunpack.c.h.b16 %v737
  %v781 = vunpack.c.l.b16 %v738
  %v782 = vunpack.c.h.b16 %v738
  %v783 = vunpack.c.l.b16 %v739
  %v784 = vunpack.c.h.b16 %v739
  %v785 = vunpack.c.l.b16 %v740
  %v786 = vunpack.c.h.b16 %v740
  %v787 = vunpack.c.l.b16 %v741
  %v788 = vunpack.c.h.b16 %v741
  %v789 = vunpack.c.l.b16 %v742
  %v790 = vunpack.c.h.b16 %v742
  %v791 = vpack.c.b16 %v761, %v759
  %v792 = vpack.c.b16 %v762, %v760
  %v793 = vpack.c.b16 %v765, %v763
  %v794 = vpack.c.b16 %v766, %v764
  %v795 = vpack.c.b16 %v769, %v767
  %v796 = vpack.c.b16 %v770, %v768
  %v797 = vpack.c.b16 %v773, %v771
  %v798 = vpack.c.b16 %v774, %v772
  %v799 = vpack.c.b16 %v777, %v775
  %v800 = vpack.c.b16 %v778, %v776
  %v801 = vpack.c.b16 %v781, %v779
  %v802 = vpack.c.b16 %v782, %v780
  %v803 = vpack.c.b16 %v785, %v783
  %v804 = vpack.c.b16 %v786, %v784
  %v805 = vpack.c.b16 %v789, %v787
  %v806 = vpack.c.b16 %v790, %v788
  %823 = vmatpush.bf16.msra.mxu0 %v213
  %824 = vmatpush.bf16.msra.mxu0 %v212
  %825 = vmatpush.bf16.msra.mxu0 %v211
  %826 = vmatpush.bf16.msra.mxu0 %v210
  %827 = vmatpush.bf16.msra.mxu0 %v209
  %828 = vmatpush.bf16.msra.mxu0 %v208
  %829 = vmatpush.bf16.msra.mxu0 %v207
  %830 = vmatpush.bf16.msra.mxu0 %v206
  %831 = vmatmul.bf16.gmra.mxu0 %v791
  %v832 = vpop.f32.mrf.mxu0
  %v833 = vadd.f32 0.0, %v832
  %v834 = vpop.f32.mrf.mxu0
  %v835 = vadd.f32 0.0, %v834
  %836 = vmatmul.bf16.gmra.mxu0 %v793
  %v837 = vpop.f32.mrf.mxu0
  %v838 = vadd.f32 0.0, %v837
  %v839 = vpop.f32.mrf.mxu0
  %v840 = vadd.f32 0.0, %v839
  %841 = vmatmul.bf16.gmra.mxu0 %v795
  %v842 = vpop.f32.mrf.mxu0
  %v843 = vadd.f32 0.0, %v842
  %v844 = vpop.f32.mrf.mxu0
  %v845 = vadd.f32 0.0, %v844
  %846 = vmatmul.bf16.gmra.mxu0 %v797
  %v847 = vpop.f32.mrf.mxu0
  %v848 = vadd.f32 0.0, %v847
  %v849 = vpop.f32.mrf.mxu0
  %v850 = vadd.f32 0.0, %v849
  %851 = vmatmul.bf16.gmra.mxu0 %v799
  %v852 = vpop.f32.mrf.mxu0
  %v853 = vadd.f32 0.0, %v852
  %v854 = vpop.f32.mrf.mxu0
  %v855 = vadd.f32 0.0, %v854
  %856 = vmatmul.bf16.gmra.mxu0 %v801
  %v857 = vpop.f32.mrf.mxu0
  %v858 = vadd.f32 0.0, %v857
  %v859 = vpop.f32.mrf.mxu0
  %v860 = vadd.f32 0.0, %v859
  %861 = vmatmul.bf16.gmra.mxu0 %v803
  %v862 = vpop.f32.mrf.mxu0
  %v863 = vadd.f32 0.0, %v862
  %v864 = vpop.f32.mrf.mxu0
  %v865 = vadd.f32 0.0, %v864
  %866 = vmatmul.bf16.gmra.mxu0 %v805
  %v867 = vpop.f32.mrf.mxu0
  %v868 = vadd.f32 0.0, %v867
  %v869 = vpop.f32.mrf.mxu0
  %v870 = vadd.f32 0.0, %v869
  %871 = vdwg.mxu0
  %872 = vmatpush.bf16.msra.mxu0 %v221
  %873 = vmatpush.bf16.msra.mxu0 %v220
  %874 = vmatpush.bf16.msra.mxu0 %v219
  %875 = vmatpush.bf16.msra.mxu0 %v218
  %876 = vmatpush.bf16.msra.mxu0 %v217
  %877 = vmatpush.bf16.msra.mxu0 %v216
  %878 = vmatpush.bf16.msra.mxu0 %v215
  %879 = vmatpush.bf16.msra.mxu0 %v214
  %880 = vmatmul.bf16.gmra.mxu0 %v792
  %v881 = vpop.f32.mrf.mxu0
  %v882 = vadd.f32 %v833, %v881
  %v883 = vpop.f32.mrf.mxu0
  %v884 = vadd.f32 %v835, %v883
  %885 = vmatmul.bf16.gmra.mxu0 %v794
  %v886 = vpop.f32.mrf.mxu0
  %v887 = vadd.f32 %v838, %v886
  %v888 = vpop.f32.mrf.mxu0
  %v889 = vadd.f32 %v840, %v888
  %890 = vmatmul.bf16.gmra.mxu0 %v796
  %v891 = vpop.f32.mrf.mxu0
  %v892 = vadd.f32 %v843, %v891
  %v893 = vpop.f32.mrf.mxu0
  %v894 = vadd.f32 %v845, %v893
  %895 = vmatmul.bf16.gmra.mxu0 %v798
  %v896 = vpop.f32.mrf.mxu0
  %v897 = vadd.f32 %v848, %v896
  %v898 = vpop.f32.mrf.mxu0
  %v899 = vadd.f32 %v850, %v898
  %900 = vmatmul.bf16.gmra.mxu0 %v800
  %v901 = vpop.f32.mrf.mxu0
  %v902 = vadd.f32 %v853, %v901
  %v903 = vpop.f32.mrf.mxu0
  %v904 = vadd.f32 %v855, %v903
  %905 = vmatmul.bf16.gmra.mxu0 %v802
  %v906 = vpop.f32.mrf.mxu0
  %v907 = vadd.f32 %v858, %v906
  %v908 = vpop.f32.mrf.mxu0
  %v909 = vadd.f32 %v860, %v908
  %910 = vmatmul.bf16.gmra.mxu0 %v804
  %v911 = vpop.f32.mrf.mxu0
  %v912 = vadd.f32 %v863, %v911
  %v913 = vpop.f32.mrf.mxu0
  %v914 = vadd.f32 %v865, %v913
  %915 = vmatmul.bf16.gmra.mxu0 %v806
  %v916 = vpop.f32.mrf.mxu0
  %v917 = vadd.f32 %v868, %v916
  %v918 = vpop.f32.mrf.mxu0
  %v919 = vadd.f32 %v870, %v918
  %920 = vdwg.mxu0
  %v921 = vmax.f32 %v297, %v492
  %v922 = vmax.f32 %v299, %v494
  %v923 = vmax.f32 %v302, %v497
  %v924 = vmax.f32 %v304, %v499
  %v925 = vmax.f32 %v307, %v502
  %v926 = vmax.f32 %v309, %v504
  %v927 = vmax.f32 %v312, %v507
  %v928 = vmax.f32 %v314, %v509
  %v929 = vmax.f32 %v317, %v512
  %v930 = vmax.f32 %v319, %v514
  %v931 = vmax.f32 %v322, %v517
  %v932 = vmax.f32 %v324, %v519
  %v933 = vmax.f32 %v327, %v522
  %v934 = vmax.f32 %v329, %v524
  %v935 = vmax.f32 %v332, %v527
  %v936 = vmax.f32 %v334, %v529
  %v937 = vmax.f32 %v687, %v882
  %v938 = vmax.f32 %v689, %v884
  %v939 = vmax.f32 %v692, %v887
  %v940 = vmax.f32 %v694, %v889
  %v941 = vmax.f32 %v697, %v892
  %v942 = vmax.f32 %v699, %v894
  %v943 = vmax.f32 %v702, %v897
  %v944 = vmax.f32 %v704, %v899
  %v945 = vmax.f32 %v707, %v902
  %v946 = vmax.f32 %v709, %v904
  %v947 = vmax.f32 %v712, %v907
  %v948 = vmax.f32 %v714, %v909
  %v949 = vmax.f32 %v717, %v912
  %v950 = vmax.f32 %v719, %v914
  %v951 = vmax.f32 %v722, %v917
  %v952 = vmax.f32 %v724, %v919
  %v953 = vmax.f32 %v921, %v937
  %v954 = vmax.f32 %v922, %v938
  %v955 = vmax.f32 %v923, %v939
  %v956 = vmax.f32 %v924, %v940
  %v957 = vmax.f32 %v925, %v941
  %v958 = vmax.f32 %v926, %v942
  %v959 = vmax.f32 %v927, %v943
  %v960 = vmax.f32 %v928, %v944
  %v961 = vmax.f32 %v929, %v945
  %v962 = vmax.f32 %v930, %v946
  %v963 = vmax.f32 %v931, %v947
  %v964 = vmax.f32 %v932, %v948
  %v965 = vmax.f32 %v933, %v949
  %v966 = vmax.f32 %v934, %v950
  %v967 = vmax.f32 %v935, %v951
  %v968 = vmax.f32 %v936, %v952
  %v969 = vld [vmem:[%s2] sm:$0x1]
  %v971 = vperm.slane %v969, 0
  %v973 = vadd.f32 %v953, %v971
  %v974 = vadd.f32 %v954, %v971
  %v975 = vadd.f32 %v955, %v971
  %v976 = vadd.f32 %v956, %v971
  %v977 = vadd.f32 %v957, %v971
  %v978 = vadd.f32 %v958, %v971
  %v979 = vadd.f32 %v959, %v971
  %v980 = vadd.f32 %v960, %v971
  %v981 = vadd.f32 %v961, %v971
  %v982 = vadd.f32 %v962, %v971
  %v983 = vadd.f32 %v963, %v971
  %v984 = vadd.f32 %v964, %v971
  %v985 = vadd.f32 %v965, %v971
  %v986 = vadd.f32 %v966, %v971
  %v987 = vadd.f32 %v967, %v971
  %v988 = vadd.f32 %v968, %v971
  %v989 = vmax.f32 %v973, 0.0
  %v990 = vmax.f32 %v974, 0.0
  %v991 = vmax.f32 %v975, 0.0
  %v992 = vmax.f32 %v976, 0.0
  %v993 = vmax.f32 %v977, 0.0
  %v994 = vmax.f32 %v978, 0.0
  %v995 = vmax.f32 %v979, 0.0
  %v996 = vmax.f32 %v980, 0.0
  %v997 = vmax.f32 %v981, 0.0
  %v998 = vmax.f32 %v982, 0.0
  %v999 = vmax.f32 %v983, 0.0
  %v1000 = vmax.f32 %v984, 0.0
  %v1001 = vmax.f32 %v985, 0.0
  %v1002 = vmax.f32 %v986, 0.0
  %v1003 = vmax.f32 %v987, 0.0
  %v1004 = vmax.f32 %v988, 0.0
  %vm1005 = vcmask 261120
  %1006 = vst.msk [vmem:[%s3] sm:$0xff] %vm1005, %v989
  %1007 = vst.msk [vmem:[%s3 + $0x8] sm:$0xff] %vm1005, %v990
  %1008 = vst.msk [vmem:[%s3 + $0x10] sm:$0xff] %vm1005, %v991
  %1009 = vst.msk [vmem:[%s3 + $0x18] sm:$0xff] %vm1005, %v992
  %1010 = vst.msk [vmem:[%s3 + $0x20] sm:$0xff] %vm1005, %v993
  %1011 = vst.msk [vmem:[%s3 + $0x28] sm:$0xff] %vm1005, %v994
  %1012 = vst.msk [vmem:[%s3 + $0x30] sm:$0xff] %vm1005, %v995
  %1013 = vst.msk [vmem:[%s3 + $0x38] sm:$0xff] %vm1005, %v996
  %1014 = vst.msk [vmem:[%s3 + $0x40] sm:$0xff] %vm1005, %v997
  %1015 = vst.msk [vmem:[%s3 + $0x48] sm:$0xff] %vm1005, %v998
  %1016 = vst.msk [vmem:[%s3 + $0x50] sm:$0xff] %vm1005, %v999
  %1017 = vst.msk [vmem:[%s3 + $0x58] sm:$0xff] %vm1005, %v1000
  %1018 = vst.msk [vmem:[%s3 + $0x60] sm:$0xff] %vm1005, %v1001
  %1019 = vst.msk [vmem:[%s3 + $0x68] sm:$0xff] %vm1005, %v1002
  %1020 = vst.msk [vmem:[%s3 + $0x70] sm:$0xff] %vm1005, %v1003
  %1021 = vst.msk [vmem:[%s3 + $0x78] sm:$0xff] %vm1005, %v1004
  // Predicated region
  $region14: #{neural_network_forward.3} parent=0 // pred_check
    _
  $region15: #{neural_network_forward.3} parent=0 // pred_check_branch
    %1023 = sbr.rel (0) target = $region17
  $region16: #{neural_network_forward.3} parent=0 // pred_region
    _
  $region17: #{neural_network_forward.3} parent=0 // pred_fallthru
    _
  // Predicated region
  $region18: #{neural_network_forward.3} parent=0 // pred_check
    _
  $region19: #{neural_network_forward.3} parent=0 // pred_check_branch
    %1025 = sbr.rel (0) target = $region21
  $region20: #{neural_network_forward.3} parent=0 // pred_region
    _
  $region21: #{neural_network_forward.3} parent=0 // pred_fallthru
    _

// kernel: neural_network_forward.4
$region0: #{neural_network_forward.4}
  #allocation0 [shape = 'u32[]', space=smem, size = 0x4, offset = 0x4, fixed_abs, tag = 'smem constant byte address 0x4 - core index']
  #allocation1 [shape = 'u32[72,128]{1,0:T(1,128)}', space=vmem, size = 0x9000, scoped, tag = 'internal scratch']
  %s0 = inlined_call_operand.vmem [shape: bf16[4,8,512], index: 0, kind: input, shape index: {}]
  %s1 = inlined_call_operand.vmem [shape: bf16[512,64], index: 1, kind: input, shape index: {}]
  %s2 = inlined_call_operand.vmem [shape: f32[1,64], index: 2, kind: input, shape index: {}]
  %s3 = inlined_call_operand.vmem [shape: f32[8,64], index: 3, kind: output, shape index: {}]
  %s4 = sld [smem:[#allocation0]]
  $region22: #{neural_network_forward.4} parent=0
    _
  %s6 = ssub.s32 1, %s4
  %s7 = scalar_select 0, %s6, %s4
  // Predicated region
  $region2: #{neural_network_forward.4} parent=0 // pred_check
    _
  $region3: #{neural_network_forward.4} parent=0 // pred_check_branch
    %9 = sbr.rel (0) target = $region5
  $region4: #{neural_network_forward.4} parent=0 // pred_region
    _
  $region5: #{neural_network_forward.4} parent=0 // pred_fallthru
    _
  // Predicated region
  $region6: #{neural_network_forward.4} parent=0 // pred_check
    _
  $region7: #{neural_network_forward.4} parent=0 // pred_check_branch
    %11 = sbr.rel (0) target = $region9
  $region8: #{neural_network_forward.4} parent=0 // pred_region
    _
  $region9: #{neural_network_forward.4} parent=0 // pred_fallthru
    _
  // Predicated region
  $region10: #{neural_network_forward.4} parent=0 // pred_check
    _
  $region11: #{neural_network_forward.4} parent=0 // pred_check_branch
    %13 = sbr.rel (0) target = $region13
  $region12: #{neural_network_forward.4} parent=0 // pred_region
    _
  $region13: #{neural_network_forward.4} parent=0 // pred_fallthru
    _
  %v14 = vld [vmem:[%s1] sm:$0xf]
  %v15 = vld [vmem:[%s1 + $0x4] sm:$0xf]
  %v16 = vld [vmem:[%s1 + $0x8] sm:$0xf]
  %v17 = vld [vmem:[%s1 + $0xc] sm:$0xf]
  %v18 = vld [vmem:[%s1 + $0x10] sm:$0xf]
  %v19 = vld [vmem:[%s1 + $0x14] sm:$0xf]
  %v20 = vld [vmem:[%s1 + $0x18] sm:$0xf]
  %v21 = vld [vmem:[%s1 + $0x1c] sm:$0xf]
  %v22 = vld [vmem:[%s1 + $0x20] sm:$0xf]
  %v23 = vld [vmem:[%s1 + $0x24] sm:$0xf]
  %v24 = vld [vmem:[%s1 + $0x28] sm:$0xf]
  %v25 = vld [vmem:[%s1 + $0x2c] sm:$0xf]
  %v26 = vld [vmem:[%s1 + $0x30] sm:$0xf]
  %v27 = vld [vmem:[%s1 + $0x34] sm:$0xf]
  %v28 = vld [vmem:[%s1 + $0x38] sm:$0xf]
  %v29 = vld [vmem:[%s1 + $0x3c] sm:$0xf]
  %v30 = vld [vmem:[%s1 + $0x40] sm:$0xf]
  %v31 = vld [vmem:[%s1 + $0x44] sm:$0xf]
  %v32 = vld [vmem:[%s1 + $0x48] sm:$0xf]
  %v33 = vld [vmem:[%s1 + $0x4c] sm:$0xf]
  %v34 = vld [vmem:[%s1 + $0x50] sm:$0xf]
  %v35 = vld [vmem:[%s1 + $0x54] sm:$0xf]
  %v36 = vld [vmem:[%s1 + $0x58] sm:$0xf]
  %v37 = vld [vmem:[%s1 + $0x5c] sm:$0xf]
  %v38 = vld [vmem:[%s1 + $0x60] sm:$0xf]
  %v39 = vld [vmem:[%s1 + $0x64] sm:$0xf]
  %v40 = vld [vmem:[%s1 + $0x68] sm:$0xf]
  %v41 = vld [vmem:[%s1 + $0x6c] sm:$0xf]
  %v42 = vld [vmem:[%s1 + $0x70] sm:$0xf]
  %v43 = vld [vmem:[%s1 + $0x74] sm:$0xf]
  %v44 = vld [vmem:[%s1 + $0x78] sm:$0xf]
  %v45 = vld [vmem:[%s1 + $0x7c] sm:$0xf]
  %v46 = vld [vmem:[%s1 + $0x80] sm:$0xf]
  %v47 = vld [vmem:[%s1 + $0x84] sm:$0xf]
  %v48 = vld [vmem:[%s1 + $0x88] sm:$0xf]
  %v49 = vld [vmem:[%s1 + $0x8c] sm:$0xf]
  %v50 = vld [vmem:[%s1 + $0x90] sm:$0xf]
  %v51 = vld [vmem:[%s1 + $0x94] sm:$0xf]
  %v52 = vld [vmem:[%s1 + $0x98] sm:$0xf]
  %v53 = vld [vmem:[%s1 + $0x9c] sm:$0xf]
  %v54 = vld [vmem:[%s1 + $0xa0] sm:$0xf]
  %v55 = vld [vmem:[%s1 + $0xa4] sm:$0xf]
  %v56 = vld [vmem:[%s1 + $0xa8] sm:$0xf]
  %v57 = vld [vmem:[%s1 + $0xac] sm:$0xf]
  %v58 = vld [vmem:[%s1 + $0xb0] sm:$0xf]
  %v59 = vld [vmem:[%s1 + $0xb4] sm:$0xf]
  %v60 = vld [vmem:[%s1 + $0xb8] sm:$0xf]
  %v61 = vld [vmem:[%s1 + $0xbc] sm:$0xf]
  %v62 = vld [vmem:[%s1 + $0xc0] sm:$0xf]
  %v63 = vld [vmem:[%s1 + $0xc4] sm:$0xf]
  %v64 = vld [vmem:[%s1 + $0xc8] sm:$0xf]
  %v65 = vld [vmem:[%s1 + $0xcc] sm:$0xf]
  %v66 = vld [vmem:[%s1 + $0xd0] sm:$0xf]
  %v67 = vld [vmem:[%s1 + $0xd4] sm:$0xf]
  %v68 = vld [vmem:[%s1 + $0xd8] sm:$0xf]
  %v69 = vld [vmem:[%s1 + $0xdc] sm:$0xf]
  %v70 = vld [vmem:[%s1 + $0xe0] sm:$0xf]
  %v71 = vld [vmem:[%s1 + $0xe4] sm:$0xf]
  %v72 = vld [vmem:[%s1 + $0xe8] sm:$0xf]
  %v73 = vld [vmem:[%s1 + $0xec] sm:$0xf]
  %v74 = vld [vmem:[%s1 + $0xf0] sm:$0xf]
  %v75 = vld [vmem:[%s1 + $0xf4] sm:$0xf]
  %v76 = vld [vmem:[%s1 + $0xf8] sm:$0xf]
  %v77 = vld [vmem:[%s1 + $0xfc] sm:$0xf]
  %v78 = vld [vmem:[%s0] sm:$0xff]
  %v79 = vld [vmem:[%s0 + $0x8] sm:$0xff]
  %v82 = vunpack.c.l.b16 %v78
  %v83 = vunpack.c.h.b16 %v78
  %v84 = vunpack.c.l.b16 %v79
  %v85 = vunpack.c.h.b16 %v79
  %v86 = vpack.c.b16 %v82, %v82
  %v87 = vpack.c.b16 %v83, %v83
  %v88 = vpack.c.b16 %v84, %v84
  %v89 = vpack.c.b16 %v85, %v85
  %v158 = vunpack.c.l.b16 %v14
  %v159 = vunpack.c.l.b16 %v15
  %v160 = vunpack.c.l.b16 %v16
  %v161 = vunpack.c.l.b16 %v17
  %v162 = vunpack.c.l.b16 %v18
  %v163 = vunpack.c.l.b16 %v19
  %v164 = vunpack.c.l.b16 %v20
  %v165 = vunpack.c.l.b16 %v21
  %v166 = vunpack.c.l.b16 %v22
  %v167 = vunpack.c.l.b16 %v23
  %v168 = vunpack.c.l.b16 %v24
  %v169 = vunpack.c.l.b16 %v25
  %v170 = vunpack.c.l.b16 %v26
  %v171 = vunpack.c.l.b16 %v27
  %v172 = vunpack.c.l.b16 %v28
  %v173 = vunpack.c.l.b16 %v29
  %v174 = vunpack.c.l.b16 %v30
  %v175 = vunpack.c.l.b16 %v31
  %v176 = vunpack.c.l.b16 %v32
  %v177 = vunpack.c.l.b16 %v33
  %v178 = vunpack.c.l.b16 %v34
  %v179 = vunpack.c.l.b16 %v35
  %v180 = vunpack.c.l.b16 %v36
  %v181 = vunpack.c.l.b16 %v37
  %v182 = vunpack.c.l.b16 %v38
  %v183 = vunpack.c.l.b16 %v39
  %v184 = vunpack.c.l.b16 %v40
  %v185 = vunpack.c.l.b16 %v41
  %v186 = vunpack.c.l.b16 %v42
  %v187 = vunpack.c.l.b16 %v43
  %v188 = vunpack.c.l.b16 %v44
  %v189 = vunpack.c.l.b16 %v45
  %v190 = vunpack.c.l.b16 %v46
  %v191 = vunpack.c.l.b16 %v47
  %v192 = vunpack.c.l.b16 %v48
  %v193 = vunpack.c.l.b16 %v49
  %v194 = vunpack.c.l.b16 %v50
  %v195 = vunpack.c.l.b16 %v51
  %v196 = vunpack.c.l.b16 %v52
  %v197 = vunpack.c.l.b16 %v53
  %v198 = vunpack.c.l.b16 %v54
  %v199 = vunpack.c.l.b16 %v55
  %v200 = vunpack.c.l.b16 %v56
  %v201 = vunpack.c.l.b16 %v57
  %v202 = vunpack.c.l.b16 %v58
  %v203 = vunpack.c.l.b16 %v59
  %v204 = vunpack.c.l.b16 %v60
  %v205 = vunpack.c.l.b16 %v61
  %v206 = vunpack.c.l.b16 %v62
  %v207 = vunpack.c.l.b16 %v63
  %v208 = vunpack.c.l.b16 %v64
  %v209 = vunpack.c.l.b16 %v65
  %v210 = vunpack.c.l.b16 %v66
  %v211 = vunpack.c.l.b16 %v67
  %v212 = vunpack.c.l.b16 %v68
  %v213 = vunpack.c.l.b16 %v69
  %v214 = vunpack.c.l.b16 %v70
  %v215 = vunpack.c.l.b16 %v71
  %v216 = vunpack.c.l.b16 %v72
  %v217 = vunpack.c.l.b16 %v73
  %v218 = vunpack.c.l.b16 %v74
  %v219 = vunpack.c.l.b16 %v75
  %v220 = vunpack.c.l.b16 %v76
  %v221 = vunpack.c.l.b16 %v77
  %v222 = vpack.c.b16 %v159, %v158
  %v223 = vpack.c.b16 %v161, %v160
  %v224 = vpack.c.b16 %v163, %v162
  %v225 = vpack.c.b16 %v165, %v164
  %v226 = vpack.c.b16 %v167, %v166
  %v227 = vpack.c.b16 %v169, %v168
  %v228 = vpack.c.b16 %v171, %v170
  %v229 = vpack.c.b16 %v173, %v172
  %v230 = vpack.c.b16 %v175, %v174
  %v231 = vpack.c.b16 %v177, %v176
  %v232 = vpack.c.b16 %v179, %v178
  %v233 = vpack.c.b16 %v181, %v180
  %v234 = vpack.c.b16 %v183, %v182
  %v235 = vpack.c.b16 %v185, %v184
  %v236 = vpack.c.b16 %v187, %v186
  %v237 = vpack.c.b16 %v189, %v188
  %v238 = vpack.c.b16 %v191, %v190
  %v239 = vpack.c.b16 %v193, %v192
  %v240 = vpack.c.b16 %v195, %v194
  %v241 = vpack.c.b16 %v197, %v196
  %v242 = vpack.c.b16 %v199, %v198
  %v243 = vpack.c.b16 %v201, %v200
  %v244 = vpack.c.b16 %v203, %v202
  %v245 = vpack.c.b16 %v205, %v204
  %v246 = vpack.c.b16 %v207, %v206
  %v247 = vpack.c.b16 %v209, %v208
  %v248 = vpack.c.b16 %v211, %v210
  %v249 = vpack.c.b16 %v213, %v212
  %v250 = vpack.c.b16 %v215, %v214
  %v251 = vpack.c.b16 %v217, %v216
  %v252 = vpack.c.b16 %v219, %v218
  %v253 = vpack.c.b16 %v221, %v220
  %286 = vmatpush.bf16.msra.mxu0 %v229
  %287 = vmatpush.bf16.msra.mxu0 %v228
  %288 = vmatpush.bf16.msra.mxu0 %v227
  %289 = vmatpush.bf16.msra.mxu0 %v226
  %290 = vmatpush.bf16.msra.mxu0 %v225
  %291 = vmatpush.bf16.msra.mxu0 %v224
  %292 = vmatpush.bf16.msra.mxu0 %v223
  %293 = vmatpush.bf16.msra.mxu0 %v222
  %294 = vmatmul.bf16.gmra.mxu0 %v86
  %v295 = vpop.f32.mrf.mxu0
  %v296 = vadd.f32 0.0, %v295
  %v297 = vpop.f32.mrf.mxu0
  %298 = vdwg.mxu0
  %299 = vmatpush.bf16.msra.mxu0 %v237
  %300 = vmatpush.bf16.msra.mxu0 %v236
  %301 = vmatpush.bf16.msra.mxu0 %v235
  %302 = vmatpush.bf16.msra.mxu0 %v234
  %303 = vmatpush.bf16.msra.mxu0 %v233
  %304 = vmatpush.bf16.msra.mxu0 %v232
  %305 = vmatpush.bf16.msra.mxu0 %v231
  %306 = vmatpush.bf16.msra.mxu0 %v230
  %307 = vmatmul.bf16.gmra.mxu0 %v87
  %v308 = vpop.f32.mrf.mxu0
  %v309 = vadd.f32 %v296, %v308
  %v310 = vpop.f32.mrf.mxu0
  %311 = vdwg.mxu0
  %312 = vmatpush.bf16.msra.mxu0 %v245
  %313 = vmatpush.bf16.msra.mxu0 %v244
  %314 = vmatpush.bf16.msra.mxu0 %v243
  %315 = vmatpush.bf16.msra.mxu0 %v242
  %316 = vmatpush.bf16.msra.mxu0 %v241
  %317 = vmatpush.bf16.msra.mxu0 %v240
  %318 = vmatpush.bf16.msra.mxu0 %v239
  %319 = vmatpush.bf16.msra.mxu0 %v238
  %320 = vmatmul.bf16.gmra.mxu0 %v88
  %v321 = vpop.f32.mrf.mxu0
  %v322 = vadd.f32 %v309, %v321
  %v323 = vpop.f32.mrf.mxu0
  %324 = vdwg.mxu0
  %325 = vmatpush.bf16.msra.mxu0 %v253
  %326 = vmatpush.bf16.msra.mxu0 %v252
  %327 = vmatpush.bf16.msra.mxu0 %v251
  %328 = vmatpush.bf16.msra.mxu0 %v250
  %329 = vmatpush.bf16.msra.mxu0 %v249
  %330 = vmatpush.bf16.msra.mxu0 %v248
  %331 = vmatpush.bf16.msra.mxu0 %v247
  %332 = vmatpush.bf16.msra.mxu0 %v246
  %333 = vmatmul.bf16.gmra.mxu0 %v89
  %v334 = vpop.f32.mrf.mxu0
  %v335 = vadd.f32 %v322, %v334
  %v336 = vpop.f32.mrf.mxu0
  %337 = vdwg.mxu0
  %s338 = scalar_lea.vmem %s0, 16
  %v339 = vld [vmem:[%s338] sm:$0xff]
  %v340 = vld [vmem:[%s338 + $0x8] sm:$0xff]
  %v343 = vunpack.c.l.b16 %v339
  %v344 = vunpack.c.h.b16 %v339
  %v345 = vunpack.c.l.b16 %v340
  %v346 = vunpack.c.h.b16 %v340
  %v347 = vpack.c.b16 %v343, %v343
  %v348 = vpack.c.b16 %v344, %v344
  %v349 = vpack.c.b16 %v345, %v345
  %v350 = vpack.c.b16 %v346, %v346
  %355 = vmatpush.bf16.msra.mxu0 %v229
  %356 = vmatpush.bf16.msra.mxu0 %v228
  %357 = vmatpush.bf16.msra.mxu0 %v227
  %358 = vmatpush.bf16.msra.mxu0 %v226
  %359 = vmatpush.bf16.msra.mxu0 %v225
  %360 = vmatpush.bf16.msra.mxu0 %v224
  %361 = vmatpush.bf16.msra.mxu0 %v223
  %362 = vmatpush.bf16.msra.mxu0 %v222
  %363 = vmatmul.bf16.gmra.mxu0 %v347
  %v364 = vpop.f32.mrf.mxu0
  %v365 = vadd.f32 0.0, %v364
  %v366 = vpop.f32.mrf.mxu0
  %367 = vdwg.mxu0
  %368 = vmatpush.bf16.msra.mxu0 %v237
  %369 = vmatpush.bf16.msra.mxu0 %v236
  %370 = vmatpush.bf16.msra.mxu0 %v235
  %371 = vmatpush.bf16.msra.mxu0 %v234
  %372 = vmatpush.bf16.msra.mxu0 %v233
  %373 = vmatpush.bf16.msra.mxu0 %v232
  %374 = vmatpush.bf16.msra.mxu0 %v231
  %375 = vmatpush.bf16.msra.mxu0 %v230
  %376 = vmatmul.bf16.gmra.mxu0 %v348
  %v377 = vpop.f32.mrf.mxu0
  %v378 = vadd.f32 %v365, %v377
  %v379 = vpop.f32.mrf.mxu0
  %380 = vdwg.mxu0
  %381 = vmatpush.bf16.msra.mxu0 %v245
  %382 = vmatpush.bf16.msra.mxu0 %v244
  %383 = vmatpush.bf16.msra.mxu0 %v243
  %384 = vmatpush.bf16.msra.mxu0 %v242
  %385 = vmatpush.bf16.msra.mxu0 %v241
  %386 = vmatpush.bf16.msra.mxu0 %v240
  %387 = vmatpush.bf16.msra.mxu0 %v239
  %388 = vmatpush.bf16.msra.mxu0 %v238
  %389 = vmatmul.bf16.gmra.mxu0 %v349
  %v390 = vpop.f32.mrf.mxu0
  %v391 = vadd.f32 %v378, %v390
  %v392 = vpop.f32.mrf.mxu0
  %393 = vdwg.mxu0
  %394 = vmatpush.bf16.msra.mxu0 %v253
  %395 = vmatpush.bf16.msra.mxu0 %v252
  %396 = vmatpush.bf16.msra.mxu0 %v251
  %397 = vmatpush.bf16.msra.mxu0 %v250
  %398 = vmatpush.bf16.msra.mxu0 %v249
  %399 = vmatpush.bf16.msra.mxu0 %v248
  %400 = vmatpush.bf16.msra.mxu0 %v247
  %401 = vmatpush.bf16.msra.mxu0 %v246
  %402 = vmatmul.bf16.gmra.mxu0 %v350
  %v403 = vpop.f32.mrf.mxu0
  %v404 = vadd.f32 %v391, %v403
  %v405 = vpop.f32.mrf.mxu0
  %406 = vdwg.mxu0
  %s407 = scalar_lea.vmem %s0, 32
  %v408 = vld [vmem:[%s407] sm:$0xff]
  %v409 = vld [vmem:[%s407 + $0x8] sm:$0xff]
  %v412 = vunpack.c.l.b16 %v408
  %v413 = vunpack.c.h.b16 %v408
  %v414 = vunpack.c.l.b16 %v409
  %v415 = vunpack.c.h.b16 %v409
  %v416 = vpack.c.b16 %v412, %v412
  %v417 = vpack.c.b16 %v413, %v413
  %v418 = vpack.c.b16 %v414, %v414
  %v419 = vpack.c.b16 %v415, %v415
  %424 = vmatpush.bf16.msra.mxu0 %v229
  %425 = vmatpush.bf16.msra.mxu0 %v228
  %426 = vmatpush.bf16.msra.mxu0 %v227
  %427 = vmatpush.bf16.msra.mxu0 %v226
  %428 = vmatpush.bf16.msra.mxu0 %v225
  %429 = vmatpush.bf16.msra.mxu0 %v224
  %430 = vmatpush.bf16.msra.mxu0 %v223
  %431 = vmatpush.bf16.msra.mxu0 %v222
  %432 = vmatmul.bf16.gmra.mxu0 %v416
  %v433 = vpop.f32.mrf.mxu0
  %v434 = vadd.f32 0.0, %v433
  %v435 = vpop.f32.mrf.mxu0
  %436 = vdwg.mxu0
  %437 = vmatpush.bf16.msra.mxu0 %v237
  %438 = vmatpush.bf16.msra.mxu0 %v236
  %439 = vmatpush.bf16.msra.mxu0 %v235
  %440 = vmatpush.bf16.msra.mxu0 %v234
  %441 = vmatpush.bf16.msra.mxu0 %v233
  %442 = vmatpush.bf16.msra.mxu0 %v232
  %443 = vmatpush.bf16.msra.mxu0 %v231
  %444 = vmatpush.bf16.msra.mxu0 %v230
  %445 = vmatmul.bf16.gmra.mxu0 %v417
  %v446 = vpop.f32.mrf.mxu0
  %v447 = vadd.f32 %v434, %v446
  %v448 = vpop.f32.mrf.mxu0
  %449 = vdwg.mxu0
  %450 = vmatpush.bf16.msra.mxu0 %v245
  %451 = vmatpush.bf16.msra.mxu0 %v244
  %452 = vmatpush.bf16.msra.mxu0 %v243
  %453 = vmatpush.bf16.msra.mxu0 %v242
  %454 = vmatpush.bf16.msra.mxu0 %v241
  %455 = vmatpush.bf16.msra.mxu0 %v240
  %456 = vmatpush.bf16.msra.mxu0 %v239
  %457 = vmatpush.bf16.msra.mxu0 %v238
  %458 = vmatmul.bf16.gmra.mxu0 %v418
  %v459 = vpop.f32.mrf.mxu0
  %v460 = vadd.f32 %v447, %v459
  %v461 = vpop.f32.mrf.mxu0
  %462 = vdwg.mxu0
  %463 = vmatpush.bf16.msra.mxu0 %v253
  %464 = vmatpush.bf16.msra.mxu0 %v252
  %465 = vmatpush.bf16.msra.mxu0 %v251
  %466 = vmatpush.bf16.msra.mxu0 %v250
  %467 = vmatpush.bf16.msra.mxu0 %v249
  %468 = vmatpush.bf16.msra.mxu0 %v248
  %469 = vmatpush.bf16.msra.mxu0 %v247
  %470 = vmatpush.bf16.msra.mxu0 %v246
  %471 = vmatmul.bf16.gmra.mxu0 %v419
  %v472 = vpop.f32.mrf.mxu0
  %v473 = vadd.f32 %v460, %v472
  %v474 = vpop.f32.mrf.mxu0
  %475 = vdwg.mxu0
  %s476 = scalar_lea.vmem %s0, 48
  %v477 = vld [vmem:[%s476] sm:$0xff]
  %v478 = vld [vmem:[%s476 + $0x8] sm:$0xff]
  %v481 = vunpack.c.l.b16 %v477
  %v482 = vunpack.c.h.b16 %v477
  %v483 = vunpack.c.l.b16 %v478
  %v484 = vunpack.c.h.b16 %v478
  %v485 = vpack.c.b16 %v481, %v481
  %v486 = vpack.c.b16 %v482, %v482
  %v487 = vpack.c.b16 %v483, %v483
  %v488 = vpack.c.b16 %v484, %v484
  %493 = vmatpush.bf16.msra.mxu0 %v229
  %494 = vmatpush.bf16.msra.mxu0 %v228
  %495 = vmatpush.bf16.msra.mxu0 %v227
  %496 = vmatpush.bf16.msra.mxu0 %v226
  %497 = vmatpush.bf16.msra.mxu0 %v225
  %498 = vmatpush.bf16.msra.mxu0 %v224
  %499 = vmatpush.bf16.msra.mxu0 %v223
  %500 = vmatpush.bf16.msra.mxu0 %v222
  %501 = vmatmul.bf16.gmra.mxu0 %v485
  %v502 = vpop.f32.mrf.mxu0
  %v503 = vadd.f32 0.0, %v502
  %v504 = vpop.f32.mrf.mxu0
  %505 = vdwg.mxu0
  %506 = vmatpush.bf16.msra.mxu0 %v237
  %507 = vmatpush.bf16.msra.mxu0 %v236
  %508 = vmatpush.bf16.msra.mxu0 %v235
  %509 = vmatpush.bf16.msra.mxu0 %v234
  %510 = vmatpush.bf16.msra.mxu0 %v233
  %511 = vmatpush.bf16.msra.mxu0 %v232
  %512 = vmatpush.bf16.msra.mxu0 %v231
  %513 = vmatpush.bf16.msra.mxu0 %v230
  %514 = vmatmul.bf16.gmra.mxu0 %v486
  %v515 = vpop.f32.mrf.mxu0
  %v516 = vadd.f32 %v503, %v515
  %v517 = vpop.f32.mrf.mxu0
  %518 = vdwg.mxu0
  %519 = vmatpush.bf16.msra.mxu0 %v245
  %520 = vmatpush.bf16.msra.mxu0 %v244
  %521 = vmatpush.bf16.msra.mxu0 %v243
  %522 = vmatpush.bf16.msra.mxu0 %v242
  %523 = vmatpush.bf16.msra.mxu0 %v241
  %524 = vmatpush.bf16.msra.mxu0 %v240
  %525 = vmatpush.bf16.msra.mxu0 %v239
  %526 = vmatpush.bf16.msra.mxu0 %v238
  %527 = vmatmul.bf16.gmra.mxu0 %v487
  %v528 = vpop.f32.mrf.mxu0
  %v529 = vadd.f32 %v516, %v528
  %v530 = vpop.f32.mrf.mxu0
  %531 = vdwg.mxu0
  %532 = vmatpush.bf16.msra.mxu0 %v253
  %533 = vmatpush.bf16.msra.mxu0 %v252
  %534 = vmatpush.bf16.msra.mxu0 %v251
  %535 = vmatpush.bf16.msra.mxu0 %v250
  %536 = vmatpush.bf16.msra.mxu0 %v249
  %537 = vmatpush.bf16.msra.mxu0 %v248
  %538 = vmatpush.bf16.msra.mxu0 %v247
  %539 = vmatpush.bf16.msra.mxu0 %v246
  %540 = vmatmul.bf16.gmra.mxu0 %v488
  %v541 = vpop.f32.mrf.mxu0
  %v542 = vadd.f32 %v529, %v541
  %v543 = vpop.f32.mrf.mxu0
  %544 = vdwg.mxu0
  %v545 = vmax.f32 %v335, %v404
  %v546 = vmax.f32 %v473, %v542
  %v547 = vmax.f32 %v545, %v546
  %v548 = vld [vmem:[%s2] sm:$0x1]
  %v550 = vperm.slane %v548, 0
  %v552 = vadd.f32 %v547, %v550
  %v553 = vmax.f32 %v552, 0.0
  %vm554 = vcmask 523264
  %555 = vst.msk [vmem:[%s3] sm:$0xff] %vm554, %v553
  // Predicated region
  $region14: #{neural_network_forward.4} parent=0 // pred_check
    _
  $region15: #{neural_network_forward.4} parent=0 // pred_check_branch
    %557 = sbr.rel (0) target = $region17
  $region16: #{neural_network_forward.4} parent=0 // pred_region
    _
  $region17: #{neural_network_forward.4} parent=0 // pred_fallthru
    _
  // Predicated region
  $region18: #{neural_network_forward.4} parent=0 // pred_check
    _
  $region19: #{neural_network_forward.4} parent=0 // pred_check_branch
    %559 = sbr.rel (0) target = $region21
  $region20: #{neural_network_forward.4} parent=0 // pred_region
    _
  $region21: #{neural_network_forward.4} parent=0 // pred_fallthru
    _

// kernel: neural_network_forward.5
$region0: #{neural_network_forward.5}
  #allocation0 [shape = 'u32[]', space=smem, size = 0x4, offset = 0x4, fixed_abs, tag = 'smem constant byte address 0x4 - core index']
  #allocation1 [shape = 'u32[72,128]{1,0:T(1,128)}', space=vmem, size = 0x9000, scoped, tag = 'internal scratch']
  %s0 = inlined_call_operand.vmem [shape: bf16[2,256], index: 0, kind: input, shape index: {}]
  %s1 = inlined_call_operand.vmem [shape: bf16[4,256,64], index: 1, kind: input, shape index: {}]
  %s2 = inlined_call_operand.vmem [shape: f32[1,64], index: 2, kind: input, shape index: {}]
  %s3 = inlined_call_operand.vmem [shape: bf16[64,512], index: 3, kind: input, shape index: {}]
  %s4 = inlined_call_operand.vmem [shape: f32[1,512], index: 4, kind: input, shape index: {}]
  %s5 = inlined_call_operand.vmem [shape: bf16[512,6], index: 5, kind: input, shape index: {}]
  %s6 = inlined_call_operand.vmem [shape: f32[1,6], index: 6, kind: input, shape index: {}]
  %s7 = inlined_call_operand.hbm [shape: f32[2,6], index: 7, kind: output, shape index: {}]
  %s8 = sld [smem:[#allocation0]]
  $region38: #{neural_network_forward.5} parent=0
    _
  %s10 = ssub.s32 1, %s8
  %s11 = scalar_select 0, %s10, %s8
  $region1: #{neural_network_forward.5} parent=0
    #allocation2 [shape = 'u8[1024]{0}', space=vmem, size = 0x400, scoped, tag = 'output window, operand 0, single buffered']
    #allocation3 [shape = 's32[1]{0}', space=sflag, size = 0x4, scoped, tag = 'scoped memory for neural_network_forward.5']
    %12 = vsyncpa [#allocation3], 0
    // Predicated region
    $region2: #{neural_network_forward.5} parent=1 // pred_check
      _
    $region3: #{neural_network_forward.5} parent=1 // pred_check_branch
      %14 = sbr.rel (0) target = $region5
    $region4: #{neural_network_forward.5} parent=1 // pred_region
      _
    $region5: #{neural_network_forward.5} parent=1 // pred_fallthru
      _
    // Predicated region
    $region6: #{neural_network_forward.5} parent=1 // pred_check
      _
    $region7: #{neural_network_forward.5} parent=1 // pred_check_branch
      %16 = sbr.rel (0) target = $region9
    $region8: #{neural_network_forward.5} parent=1 // pred_region
      _
    $region9: #{neural_network_forward.5} parent=1 // pred_fallthru
      _
    // Predicated region
    $region10: #{neural_network_forward.5} parent=1 // pred_check
      _
    $region11: #{neural_network_forward.5} parent=1 // pred_check_branch
      %18 = sbr.rel (0) target = $region13
    $region12: #{neural_network_forward.5} parent=1 // pred_region
      _
    $region13: #{neural_network_forward.5} parent=1 // pred_fallthru
      _
    // Predicated region
    $region14: #{neural_network_forward.5} parent=1 // pred_check
      _
    $region15: #{neural_network_forward.5} parent=1 // pred_check_branch
      %20 = sbr.rel (0) target = $region17
    $region16: #{neural_network_forward.5} parent=1 // pred_region
      _
    $region17: #{neural_network_forward.5} parent=1 // pred_fallthru
      _
    // Predicated region
    $region18: #{neural_network_forward.5} parent=1 // pred_check
      _
    $region19: #{neural_network_forward.5} parent=1 // pred_check_branch
      %22 = sbr.rel (0) target = $region21
    $region20: #{neural_network_forward.5} parent=1 // pred_region
      _
    $region21: #{neural_network_forward.5} parent=1 // pred_fallthru
      _
    // Predicated region
    $region22: #{neural_network_forward.5} parent=1 // pred_check
      _
    $region23: #{neural_network_forward.5} parent=1 // pred_check_branch
      %24 = sbr.rel (0) target = $region25
    $region24: #{neural_network_forward.5} parent=1 // pred_region
      _
    $region25: #{neural_network_forward.5} parent=1 // pred_fallthru
      _
    // Predicated region
    $region26: #{neural_network_forward.5} parent=1 // pred_check
      _
    $region27: #{neural_network_forward.5} parent=1 // pred_check_branch
      %26 = sbr.rel (0) target = $region29
    $region28: #{neural_network_forward.5} parent=1 // pred_region
      _
    $region29: #{neural_network_forward.5} parent=1 // pred_fallthru
      _
    %v28 = vld [vmem:[%s0] sm:$0x3]
    %v29 = vld [vmem:[%s1] sm:$0xf]
    %v30 = vld [vmem:[%s1 + $0x4] sm:$0xf]
    %v31 = vld [vmem:[%s1 + $0x8] sm:$0xf]
    %v32 = vld [vmem:[%s1 + $0xc] sm:$0xf]
    %v33 = vld [vmem:[%s1 + $0x10] sm:$0xf]
    %v34 = vld [vmem:[%s1 + $0x14] sm:$0xf]
    %v35 = vld [vmem:[%s1 + $0x18] sm:$0xf]
    %v36 = vld [vmem:[%s1 + $0x1c] sm:$0xf]
    %v37 = vld [vmem:[%s1 + $0x20] sm:$0xf]
    %v38 = vld [vmem:[%s1 + $0x24] sm:$0xf]
    %v39 = vld [vmem:[%s1 + $0x28] sm:$0xf]
    %v40 = vld [vmem:[%s1 + $0x2c] sm:$0xf]
    %v41 = vld [vmem:[%s1 + $0x30] sm:$0xf]
    %v42 = vld [vmem:[%s1 + $0x34] sm:$0xf]
    %v43 = vld [vmem:[%s1 + $0x38] sm:$0xf]
    %v44 = vld [vmem:[%s1 + $0x3c] sm:$0xf]
    %v45 = vld [vmem:[%s1 + $0x40] sm:$0xf]
    %v46 = vld [vmem:[%s1 + $0x44] sm:$0xf]
    %v47 = vld [vmem:[%s1 + $0x48] sm:$0xf]
    %v48 = vld [vmem:[%s1 + $0x4c] sm:$0xf]
    %v49 = vld [vmem:[%s1 + $0x50] sm:$0xf]
    %v50 = vld [vmem:[%s1 + $0x54] sm:$0xf]
    %v51 = vld [vmem:[%s1 + $0x58] sm:$0xf]
    %v52 = vld [vmem:[%s1 + $0x5c] sm:$0xf]
    %v53 = vld [vmem:[%s1 + $0x60] sm:$0xf]
    %v54 = vld [vmem:[%s1 + $0x64] sm:$0xf]
    %v55 = vld [vmem:[%s1 + $0x68] sm:$0xf]
    %v56 = vld [vmem:[%s1 + $0x6c] sm:$0xf]
    %v57 = vld [vmem:[%s1 + $0x70] sm:$0xf]
    %v58 = vld [vmem:[%s1 + $0x74] sm:$0xf]
    %v59 = vld [vmem:[%s1 + $0x78] sm:$0xf]
    %v60 = vld [vmem:[%s1 + $0x7c] sm:$0xf]
    %62 = vst [vmem:[#allocation1] ss:$9 sm:$0xff] %v28
    %v63 = vld [vmem:[#allocation1] sm:$0xff]
    %v64 = vld [vmem:[#allocation1 + $0x9] sm:$0xff]
    %v99 = vunpack.c.l.b16 %v29
    %v100 = vunpack.c.l.b16 %v30
    %v101 = vunpack.c.l.b16 %v31
    %v102 = vunpack.c.l.b16 %v32
    %v103 = vunpack.c.l.b16 %v33
    %v104 = vunpack.c.l.b16 %v34
    %v105 = vunpack.c.l.b16 %v35
    %v106 = vunpack.c.l.b16 %v36
    %v107 = vunpack.c.l.b16 %v37
    %v108 = vunpack.c.l.b16 %v38
    %v109 = vunpack.c.l.b16 %v39
    %v110 = vunpack.c.l.b16 %v40
    %v111 = vunpack.c.l.b16 %v41
    %v112 = vunpack.c.l.b16 %v42
    %v113 = vunpack.c.l.b16 %v43
    %v114 = vunpack.c.l.b16 %v44
    %v115 = vunpack.c.l.b16 %v45
    %v116 = vunpack.c.l.b16 %v46
    %v117 = vunpack.c.l.b16 %v47
    %v118 = vunpack.c.l.b16 %v48
    %v119 = vunpack.c.l.b16 %v49
    %v120 = vunpack.c.l.b16 %v50
    %v121 = vunpack.c.l.b16 %v51
    %v122 = vunpack.c.l.b16 %v52
    %v123 = vunpack.c.l.b16 %v53
    %v124 = vunpack.c.l.b16 %v54
    %v125 = vunpack.c.l.b16 %v55
    %v126 = vunpack.c.l.b16 %v56
    %v127 = vunpack.c.l.b16 %v57
    %v128 = vunpack.c.l.b16 %v58
    %v129 = vunpack.c.l.b16 %v59
    %v130 = vunpack.c.l.b16 %v60
    %v131 = vpack.c.b16 %v100, %v99
    %v132 = vpack.c.b16 %v102, %v101
    %v133 = vpack.c.b16 %v104, %v103
    %v134 = vpack.c.b16 %v106, %v105
    %v135 = vpack.c.b16 %v108, %v107
    %v136 = vpack.c.b16 %v110, %v109
    %v137 = vpack.c.b16 %v112, %v111
    %v138 = vpack.c.b16 %v114, %v113
    %v139 = vpack.c.b16 %v116, %v115
    %v140 = vpack.c.b16 %v118, %v117
    %v141 = vpack.c.b16 %v120, %v119
    %v142 = vpack.c.b16 %v122, %v121
    %v143 = vpack.c.b16 %v124, %v123
    %v144 = vpack.c.b16 %v126, %v125
    %v145 = vpack.c.b16 %v128, %v127
    %v146 = vpack.c.b16 %v130, %v129
    %163 = vmatpush.bf16.msra.mxu0 %v138
    %164 = vmatpush.bf16.msra.mxu0 %v137
    %165 = vmatpush.bf16.msra.mxu0 %v136
    %166 = vmatpush.bf16.msra.mxu0 %v135
    %167 = vmatpush.bf16.msra.mxu0 %v134
    %168 = vmatpush.bf16.msra.mxu0 %v133
    %169 = vmatpush.bf16.msra.mxu0 %v132
    %170 = vmatpush.bf16.msra.mxu0 %v131
    %171 = vmatmul.bf16.gmra.mxu0 %v63
    %v172 = vpop.f32.mrf.mxu0
    %v173 = vadd.f32 0.0, %v172
    %v174 = vpop.f32.mrf.mxu0
    %175 = vdwg.mxu0
    %176 = vmatpush.bf16.msra.mxu0 %v146
    %177 = vmatpush.bf16.msra.mxu0 %v145
    %178 = vmatpush.bf16.msra.mxu0 %v144
    %179 = vmatpush.bf16.msra.mxu0 %v143
    %180 = vmatpush.bf16.msra.mxu0 %v142
    %181 = vmatpush.bf16.msra.mxu0 %v141
    %182 = vmatpush.bf16.msra.mxu0 %v140
    %183 = vmatpush.bf16.msra.mxu0 %v139
    %184 = vmatmul.bf16.gmra.mxu0 %v64
    %v185 = vpop.f32.mrf.mxu0
    %v186 = vadd.f32 %v173, %v185
    %v187 = vpop.f32.mrf.mxu0
    %188 = vdwg.mxu0
    %s189 = scalar_lea.vmem %s1, 128
    %v190 = vld [vmem:[%s189] sm:$0xf]
    %v191 = vld [vmem:[%s189 + $0x4] sm:$0xf]
    %v192 = vld [vmem:[%s189 + $0x8] sm:$0xf]
    %v193 = vld [vmem:[%s189 + $0xc] sm:$0xf]
    %v194 = vld [vmem:[%s189 + $0x10] sm:$0xf]
    %v195 = vld [vmem:[%s189 + $0x14] sm:$0xf]
    %v196 = vld [vmem:[%s189 + $0x18] sm:$0xf]
    %v197 = vld [vmem:[%s189 + $0x1c] sm:$0xf]
    %v198 = vld [vmem:[%s189 + $0x20] sm:$0xf]
    %v199 = vld [vmem:[%s189 + $0x24] sm:$0xf]
    %v200 = vld [vmem:[%s189 + $0x28] sm:$0xf]
    %v201 = vld [vmem:[%s189 + $0x2c] sm:$0xf]
    %v202 = vld [vmem:[%s189 + $0x30] sm:$0xf]
    %v203 = vld [vmem:[%s189 + $0x34] sm:$0xf]
    %v204 = vld [vmem:[%s189 + $0x38] sm:$0xf]
    %v205 = vld [vmem:[%s189 + $0x3c] sm:$0xf]
    %v206 = vld [vmem:[%s189 + $0x40] sm:$0xf]
    %v207 = vld [vmem:[%s189 + $0x44] sm:$0xf]
    %v208 = vld [vmem:[%s189 + $0x48] sm:$0xf]
    %v209 = vld [vmem:[%s189 + $0x4c] sm:$0xf]
    %v210 = vld [vmem:[%s189 + $0x50] sm:$0xf]
    %v211 = vld [vmem:[%s189 + $0x54] sm:$0xf]
    %v212 = vld [vmem:[%s189 + $0x58] sm:$0xf]
    %v213 = vld [vmem:[%s189 + $0x5c] sm:$0xf]
    %v214 = vld [vmem:[%s189 + $0x60] sm:$0xf]
    %v215 = vld [vmem:[%s189 + $0x64] sm:$0xf]
    %v216 = vld [vmem:[%s189 + $0x68] sm:$0xf]
    %v217 = vld [vmem:[%s189 + $0x6c] sm:$0xf]
    %v218 = vld [vmem:[%s189 + $0x70] sm:$0xf]
    %v219 = vld [vmem:[%s189 + $0x74] sm:$0xf]
    %v220 = vld [vmem:[%s189 + $0x78] sm:$0xf]
    %v221 = vld [vmem:[%s189 + $0x7c] sm:$0xf]
    %222 = vst [vmem:[#allocation1] ss:$9 sm:$0xff] %v28
    %v223 = vld [vmem:[#allocation1] sm:$0xff]
    %v224 = vld [vmem:[#allocation1 + $0x9] sm:$0xff]
    %v259 = vunpack.c.l.b16 %v190
    %v260 = vunpack.c.l.b16 %v191
    %v261 = vunpack.c.l.b16 %v192
    %v262 = vunpack.c.l.b16 %v193
    %v263 = vunpack.c.l.b16 %v194
    %v264 = vunpack.c.l.b16 %v195
    %v265 = vunpack.c.l.b16 %v196
    %v266 = vunpack.c.l.b16 %v197
    %v267 = vunpack.c.l.b16 %v198
    %v268 = vunpack.c.l.b16 %v199
    %v269 = vunpack.c.l.b16 %v200
    %v270 = vunpack.c.l.b16 %v201
    %v271 = vunpack.c.l.b16 %v202
    %v272 = vunpack.c.l.b16 %v203
    %v273 = vunpack.c.l.b16 %v204
    %v274 = vunpack.c.l.b16 %v205
    %v275 = vunpack.c.l.b16 %v206
    %v276 = vunpack.c.l.b16 %v207
    %v277 = vunpack.c.l.b16 %v208
    %v278 = vunpack.c.l.b16 %v209
    %v279 = vunpack.c.l.b16 %v210
    %v280 = vunpack.c.l.b16 %v211
    %v281 = vunpack.c.l.b16 %v212
    %v282 = vunpack.c.l.b16 %v213
    %v283 = vunpack.c.l.b16 %v214
    %v284 = vunpack.c.l.b16 %v215
    %v285 = vunpack.c.l.b16 %v216
    %v286 = vunpack.c.l.b16 %v217
    %v287 = vunpack.c.l.b16 %v218
    %v288 = vunpack.c.l.b16 %v219
    %v289 = vunpack.c.l.b16 %v220
    %v290 = vunpack.c.l.b16 %v221
    %v291 = vpack.c.b16 %v260, %v259
    %v292 = vpack.c.b16 %v262, %v261
    %v293 = vpack.c.b16 %v264, %v263
    %v294 = vpack.c.b16 %v266, %v265
    %v295 = vpack.c.b16 %v268, %v267
    %v296 = vpack.c.b16 %v270, %v269
    %v297 = vpack.c.b16 %v272, %v271
    %v298 = vpack.c.b16 %v274, %v273
    %v299 = vpack.c.b16 %v276, %v275
    %v300 = vpack.c.b16 %v278, %v277
    %v301 = vpack.c.b16 %v280, %v279
    %v302 = vpack.c.b16 %v282, %v281
    %v303 = vpack.c.b16 %v284, %v283
    %v304 = vpack.c.b16 %v286, %v285
    %v305 = vpack.c.b16 %v288, %v287
    %v306 = vpack.c.b16 %v290, %v289
    %323 = vmatpush.bf16.msra.mxu0 %v298
    %324 = vmatpush.bf16.msra.mxu0 %v297
    %325 = vmatpush.bf16.msra.mxu0 %v296
    %326 = vmatpush.bf16.msra.mxu0 %v295
    %327 = vmatpush.bf16.msra.mxu0 %v294
    %328 = vmatpush.bf16.msra.mxu0 %v293
    %329 = vmatpush.bf16.msra.mxu0 %v292
    %330 = vmatpush.bf16.msra.mxu0 %v291
    %331 = vmatmul.bf16.gmra.mxu0 %v223
    %v332 = vpop.f32.mrf.mxu0
    %v333 = vadd.f32 0.0, %v332
    %v334 = vpop.f32.mrf.mxu0
    %335 = vdwg.mxu0
    %336 = vmatpush.bf16.msra.mxu0 %v306
    %337 = vmatpush.bf16.msra.mxu0 %v305
    %338 = vmatpush.bf16.msra.mxu0 %v304
    %339 = vmatpush.bf16.msra.mxu0 %v303
    %340 = vmatpush.bf16.msra.mxu0 %v302
    %341 = vmatpush.bf16.msra.mxu0 %v301
    %342 = vmatpush.bf16.msra.mxu0 %v300
    %343 = vmatpush.bf16.msra.mxu0 %v299
    %344 = vmatmul.bf16.gmra.mxu0 %v224
    %v345 = vpop.f32.mrf.mxu0
    %v346 = vadd.f32 %v333, %v345
    %v347 = vpop.f32.mrf.mxu0
    %348 = vdwg.mxu0
    %s349 = scalar_lea.vmem %s1, 256
    %v350 = vld [vmem:[%s349] sm:$0xf]
    %v351 = vld [vmem:[%s349 + $0x4] sm:$0xf]
    %v352 = vld [vmem:[%s349 + $0x8] sm:$0xf]
    %v353 = vld [vmem:[%s349 + $0xc] sm:$0xf]
    %v354 = vld [vmem:[%s349 + $0x10] sm:$0xf]
    %v355 = vld [vmem:[%s349 + $0x14] sm:$0xf]
    %v356 = vld [vmem:[%s349 + $0x18] sm:$0xf]
    %v357 = vld [vmem:[%s349 + $0x1c] sm:$0xf]
    %v358 = vld [vmem:[%s349 + $0x20] sm:$0xf]
    %v359 = vld [vmem:[%s349 + $0x24] sm:$0xf]
    %v360 = vld [vmem:[%s349 + $0x28] sm:$0xf]
    %v361 = vld [vmem:[%s349 + $0x2c] sm:$0xf]
    %v362 = vld [vmem:[%s349 + $0x30] sm:$0xf]
    %v363 = vld [vmem:[%s349 + $0x34] sm:$0xf]
    %v364 = vld [vmem:[%s349 + $0x38] sm:$0xf]
    %v365 = vld [vmem:[%s349 + $0x3c] sm:$0xf]
    %v366 = vld [vmem:[%s349 + $0x40] sm:$0xf]
    %v367 = vld [vmem:[%s349 + $0x44] sm:$0xf]
    %v368 = vld [vmem:[%s349 + $0x48] sm:$0xf]
    %v369 = vld [vmem:[%s349 + $0x4c] sm:$0xf]
    %v370 = vld [vmem:[%s349 + $0x50] sm:$0xf]
    %v371 = vld [vmem:[%s349 + $0x54] sm:$0xf]
    %v372 = vld [vmem:[%s349 + $0x58] sm:$0xf]
    %v373 = vld [vmem:[%s349 + $0x5c] sm:$0xf]
    %v374 = vld [vmem:[%s349 + $0x60] sm:$0xf]
    %v375 = vld [vmem:[%s349 + $0x64] sm:$0xf]
    %v376 = vld [vmem:[%s349 + $0x68] sm:$0xf]
    %v377 = vld [vmem:[%s349 + $0x6c] sm:$0xf]
    %v378 = vld [vmem:[%s349 + $0x70] sm:$0xf]
    %v379 = vld [vmem:[%s349 + $0x74] sm:$0xf]
    %v380 = vld [vmem:[%s349 + $0x78] sm:$0xf]
    %v381 = vld [vmem:[%s349 + $0x7c] sm:$0xf]
    %382 = vst [vmem:[#allocation1] ss:$9 sm:$0xff] %v28
    %v383 = vld [vmem:[#allocation1] sm:$0xff]
    %v384 = vld [vmem:[#allocation1 + $0x9] sm:$0xff]
    %v419 = vunpack.c.l.b16 %v350
    %v420 = vunpack.c.l.b16 %v351
    %v421 = vunpack.c.l.b16 %v352
    %v422 = vunpack.c.l.b16 %v353
    %v423 = vunpack.c.l.b16 %v354
    %v424 = vunpack.c.l.b16 %v355
    %v425 = vunpack.c.l.b16 %v356
    %v426 = vunpack.c.l.b16 %v357
    %v427 = vunpack.c.l.b16 %v358
    %v428 = vunpack.c.l.b16 %v359
    %v429 = vunpack.c.l.b16 %v360
    %v430 = vunpack.c.l.b16 %v361
    %v431 = vunpack.c.l.b16 %v362
    %v432 = vunpack.c.l.b16 %v363
    %v433 = vunpack.c.l.b16 %v364
    %v434 = vunpack.c.l.b16 %v365
    %v435 = vunpack.c.l.b16 %v366
    %v436 = vunpack.c.l.b16 %v367
    %v437 = vunpack.c.l.b16 %v368
    %v438 = vunpack.c.l.b16 %v369
    %v439 = vunpack.c.l.b16 %v370
    %v440 = vunpack.c.l.b16 %v371
    %v441 = vunpack.c.l.b16 %v372
    %v442 = vunpack.c.l.b16 %v373
    %v443 = vunpack.c.l.b16 %v374
    %v444 = vunpack.c.l.b16 %v375
    %v445 = vunpack.c.l.b16 %v376
    %v446 = vunpack.c.l.b16 %v377
    %v447 = vunpack.c.l.b16 %v378
    %v448 = vunpack.c.l.b16 %v379
    %v449 = vunpack.c.l.b16 %v380
    %v450 = vunpack.c.l.b16 %v381
    %v451 = vpack.c.b16 %v420, %v419
    %v452 = vpack.c.b16 %v422, %v421
    %v453 = vpack.c.b16 %v424, %v423
    %v454 = vpack.c.b16 %v426, %v425
    %v455 = vpack.c.b16 %v428, %v427
    %v456 = vpack.c.b16 %v430, %v429
    %v457 = vpack.c.b16 %v432, %v431
    %v458 = vpack.c.b16 %v434, %v433
    %v459 = vpack.c.b16 %v436, %v435
    %v460 = vpack.c.b16 %v438, %v437
    %v461 = vpack.c.b16 %v440, %v439
    %v462 = vpack.c.b16 %v442, %v441
    %v463 = vpack.c.b16 %v444, %v443
    %v464 = vpack.c.b16 %v446, %v445
    %v465 = vpack.c.b16 %v448, %v447
    %v466 = vpack.c.b16 %v450, %v449
    %483 = vmatpush.bf16.msra.mxu0 %v458
    %484 = vmatpush.bf16.msra.mxu0 %v457
    %485 = vmatpush.bf16.msra.mxu0 %v456
    %486 = vmatpush.bf16.msra.mxu0 %v455
    %487 = vmatpush.bf16.msra.mxu0 %v454
    %488 = vmatpush.bf16.msra.mxu0 %v453
    %489 = vmatpush.bf16.msra.mxu0 %v452
    %490 = vmatpush.bf16.msra.mxu0 %v451
    %491 = vmatmul.bf16.gmra.mxu0 %v383
    %v492 = vpop.f32.mrf.mxu0
    %v493 = vadd.f32 0.0, %v492
    %v494 = vpop.f32.mrf.mxu0
    %495 = vdwg.mxu0
    %496 = vmatpush.bf16.msra.mxu0 %v466
    %497 = vmatpush.bf16.msra.mxu0 %v465
    %498 = vmatpush.bf16.msra.mxu0 %v464
    %499 = vmatpush.bf16.msra.mxu0 %v463
    %500 = vmatpush.bf16.msra.mxu0 %v462
    %501 = vmatpush.bf16.msra.mxu0 %v461
    %502 = vmatpush.bf16.msra.mxu0 %v460
    %503 = vmatpush.bf16.msra.mxu0 %v459
    %504 = vmatmul.bf16.gmra.mxu0 %v384
    %v505 = vpop.f32.mrf.mxu0
    %v506 = vadd.f32 %v493, %v505
    %v507 = vpop.f32.mrf.mxu0
    %508 = vdwg.mxu0
    %s509 = scalar_lea.vmem %s1, 384
    %v510 = vld [vmem:[%s509] sm:$0xf]
    %v511 = vld [vmem:[%s509 + $0x4] sm:$0xf]
    %v512 = vld [vmem:[%s509 + $0x8] sm:$0xf]
    %v513 = vld [vmem:[%s509 + $0xc] sm:$0xf]
    %v514 = vld [vmem:[%s509 + $0x10] sm:$0xf]
    %v515 = vld [vmem:[%s509 + $0x14] sm:$0xf]
    %v516 = vld [vmem:[%s509 + $0x18] sm:$0xf]
    %v517 = vld [vmem:[%s509 + $0x1c] sm:$0xf]
    %v518 = vld [vmem:[%s509 + $0x20] sm:$0xf]
    %v519 = vld [vmem:[%s509 + $0x24] sm:$0xf]
    %v520 = vld [vmem:[%s509 + $0x28] sm:$0xf]
    %v521 = vld [vmem:[%s509 + $0x2c] sm:$0xf]
    %v522 = vld [vmem:[%s509 + $0x30] sm:$0xf]
    %v523 = vld [vmem:[%s509 + $0x34] sm:$0xf]
    %v524 = vld [vmem:[%s509 + $0x38] sm:$0xf]
    %v525 = vld [vmem:[%s509 + $0x3c] sm:$0xf]
    %v526 = vld [vmem:[%s509 + $0x40] sm:$0xf]
    %v527 = vld [vmem:[%s509 + $0x44] sm:$0xf]
    %v528 = vld [vmem:[%s509 + $0x48] sm:$0xf]
    %v529 = vld [vmem:[%s509 + $0x4c] sm:$0xf]
    %v530 = vld [vmem:[%s509 + $0x50] sm:$0xf]
    %v531 = vld [vmem:[%s509 + $0x54] sm:$0xf]
    %v532 = vld [vmem:[%s509 + $0x58] sm:$0xf]
    %v533 = vld [vmem:[%s509 + $0x5c] sm:$0xf]
    %v534 = vld [vmem:[%s509 + $0x60] sm:$0xf]
    %v535 = vld [vmem:[%s509 + $0x64] sm:$0xf]
    %v536 = vld [vmem:[%s509 + $0x68] sm:$0xf]
    %v537 = vld [vmem:[%s509 + $0x6c] sm:$0xf]
    %v538 = vld [vmem:[%s509 + $0x70] sm:$0xf]
    %v539 = vld [vmem:[%s509 + $0x74] sm:$0xf]
    %v540 = vld [vmem:[%s509 + $0x78] sm:$0xf]
    %v541 = vld [vmem:[%s509 + $0x7c] sm:$0xf]
    %542 = vst [vmem:[#allocation1] ss:$9 sm:$0xff] %v28
    %v543 = vld [vmem:[#allocation1] sm:$0xff]
    %v544 = vld [vmem:[#allocation1 + $0x9] sm:$0xff]
    %v579 = vunpack.c.l.b16 %v510
    %v580 = vunpack.c.l.b16 %v511
    %v581 = vunpack.c.l.b16 %v512
    %v582 = vunpack.c.l.b16 %v513
    %v583 = vunpack.c.l.b16 %v514
    %v584 = vunpack.c.l.b16 %v515
    %v585 = vunpack.c.l.b16 %v516
    %v586 = vunpack.c.l.b16 %v517
    %v587 = vunpack.c.l.b16 %v518
    %v588 = vunpack.c.l.b16 %v519
    %v589 = vunpack.c.l.b16 %v520
    %v590 = vunpack.c.l.b16 %v521
    %v591 = vunpack.c.l.b16 %v522
    %v592 = vunpack.c.l.b16 %v523
    %v593 = vunpack.c.l.b16 %v524
    %v594 = vunpack.c.l.b16 %v525
    %v595 = vunpack.c.l.b16 %v526
    %v596 = vunpack.c.l.b16 %v527
    %v597 = vunpack.c.l.b16 %v528
    %v598 = vunpack.c.l.b16 %v529
    %v599 = vunpack.c.l.b16 %v530
    %v600 = vunpack.c.l.b16 %v531
    %v601 = vunpack.c.l.b16 %v532
    %v602 = vunpack.c.l.b16 %v533
    %v603 = vunpack.c.l.b16 %v534
    %v604 = vunpack.c.l.b16 %v535
    %v605 = vunpack.c.l.b16 %v536
    %v606 = vunpack.c.l.b16 %v537
    %v607 = vunpack.c.l.b16 %v538
    %v608 = vunpack.c.l.b16 %v539
    %v609 = vunpack.c.l.b16 %v540
    %v610 = vunpack.c.l.b16 %v541
    %v611 = vpack.c.b16 %v580, %v579
    %v612 = vpack.c.b16 %v582, %v581
    %v613 = vpack.c.b16 %v584, %v583
    %v614 = vpack.c.b16 %v586, %v585
    %v615 = vpack.c.b16 %v588, %v587
    %v616 = vpack.c.b16 %v590, %v589
    %v617 = vpack.c.b16 %v592, %v591
    %v618 = vpack.c.b16 %v594, %v593
    %v619 = vpack.c.b16 %v596, %v595
    %v620 = vpack.c.b16 %v598, %v597
    %v621 = vpack.c.b16 %v600, %v599
    %v622 = vpack.c.b16 %v602, %v601
    %v623 = vpack.c.b16 %v604, %v603
    %v624 = vpack.c.b16 %v606, %v605
    %v625 = vpack.c.b16 %v608, %v607
    %v626 = vpack.c.b16 %v610, %v609
    %643 = vmatpush.bf16.msra.mxu0 %v618
    %644 = vmatpush.bf16.msra.mxu0 %v617
    %645 = vmatpush.bf16.msra.mxu0 %v616
    %646 = vmatpush.bf16.msra.mxu0 %v615
    %647 = vmatpush.bf16.msra.mxu0 %v614
    %648 = vmatpush.bf16.msra.mxu0 %v613
    %649 = vmatpush.bf16.msra.mxu0 %v612
    %650 = vmatpush.bf16.msra.mxu0 %v611
    %651 = vmatmul.bf16.gmra.mxu0 %v543
    %v652 = vpop.f32.mrf.mxu0
    %v653 = vadd.f32 0.0, %v652
    %v654 = vpop.f32.mrf.mxu0
    %655 = vdwg.mxu0
    %656 = vmatpush.bf16.msra.mxu0 %v626
    %657 = vmatpush.bf16.msra.mxu0 %v625
    %658 = vmatpush.bf16.msra.mxu0 %v624
    %659 = vmatpush.bf16.msra.mxu0 %v623
    %660 = vmatpush.bf16.msra.mxu0 %v622
    %661 = vmatpush.bf16.msra.mxu0 %v621
    %662 = vmatpush.bf16.msra.mxu0 %v620
    %663 = vmatpush.bf16.msra.mxu0 %v619
    %664 = vmatmul.bf16.gmra.mxu0 %v544
    %v665 = vpop.f32.mrf.mxu0
    %v666 = vadd.f32 %v653, %v665
    %v667 = vpop.f32.mrf.mxu0
    %668 = vdwg.mxu0
    %v669 = vmax.f32 %v186, %v346
    %v670 = vmax.f32 %v506, %v666
    %v671 = vmax.f32 %v669, %v670
    %v672 = vld [vmem:[%s2] sm:$0x1]
    %v674 = vperm.slane %v672, 0
    %v676 = vadd.f32 %v671, %v674
    %v677 = vmax.f32 %v676, 0.0
    %v678 = vpack.c.bf16 %v677, %v677
    %v679 = vld [vmem:[%s3] sm:$0xff]
    %v680 = vld [vmem:[%s3 + $0x8] sm:$0xff]
    %v681 = vld [vmem:[%s3 + $0x10] sm:$0xff]
    %v682 = vld [vmem:[%s3 + $0x18] sm:$0xff]
    %v683 = vld [vmem:[%s3 + $0x20] sm:$0xff]
    %v684 = vld [vmem:[%s3 + $0x28] sm:$0xff]
    %v685 = vld [vmem:[%s3 + $0x30] sm:$0xff]
    %v686 = vld [vmem:[%s3 + $0x38] sm:$0xff]
    %v687 = vld [vmem:[%s3 + $0x40] sm:$0xff]
    %v688 = vld [vmem:[%s3 + $0x48] sm:$0xff]
    %v689 = vld [vmem:[%s3 + $0x50] sm:$0xff]
    %v690 = vld [vmem:[%s3 + $0x58] sm:$0xff]
    %v691 = vld [vmem:[%s3 + $0x60] sm:$0xff]
    %v692 = vld [vmem:[%s3 + $0x68] sm:$0xff]
    %v693 = vld [vmem:[%s3 + $0x70] sm:$0xff]
    %v694 = vld [vmem:[%s3 + $0x78] sm:$0xff]
    %v695 = vld [vmem:[%s4] sm:$0xf]
    %v697 = vperm.slane %v695, 0
    %v698 = vperm.slane %v695, 1
    %v699 = vperm.slane %v695, 2
    %v700 = vperm.slane %v695, 3
    %v721 = vunpack.c.l.b16 %v679
    %v722 = vunpack.c.h.b16 %v679
    %v723 = vunpack.c.l.b16 %v680
    %v724 = vunpack.c.h.b16 %v680
    %v725 = vunpack.c.l.b16 %v681
    %v726 = vunpack.c.h.b16 %v681
    %v727 = vunpack.c.l.b16 %v682
    %v728 = vunpack.c.h.b16 %v682
    %v729 = vunpack.c.l.b16 %v683
    %v730 = vunpack.c.h.b16 %v683
    %v731 = vunpack.c.l.b16 %v684
    %v732 = vunpack.c.h.b16 %v684
    %v733 = vunpack.c.l.b16 %v685
    %v734 = vunpack.c.h.b16 %v685
    %v735 = vunpack.c.l.b16 %v686
    %v736 = vunpack.c.h.b16 %v686
    %v737 = vunpack.c.l.b16 %v687
    %v738 = vunpack.c.h.b16 %v687
    %v739 = vunpack.c.l.b16 %v688
    %v740 = vunpack.c.h.b16 %v688
    %v741 = vunpack.c.l.b16 %v689
    %v742 = vunpack.c.h.b16 %v689
    %v743 = vunpack.c.l.b16 %v690
    %v744 = vunpack.c.h.b16 %v690
    %v745 = vunpack.c.l.b16 %v691
    %v746 = vunpack.c.h.b16 %v691
    %v747 = vunpack.c.l.b16 %v692
    %v748 = vunpack.c.h.b16 %v692
    %v749 = vunpack.c.l.b16 %v693
    %v750 = vunpack.c.h.b16 %v693
    %v751 = vunpack.c.l.b16 %v694
    %v752 = vunpack.c.h.b16 %v694
    %v753 = vpack.c.b16 %v725, %v721
    %v754 = vpack.c.b16 %v726, %v722
    %v755 = vpack.c.b16 %v727, %v723
    %v756 = vpack.c.b16 %v728, %v724
    %v757 = vpack.c.b16 %v733, %v729
    %v758 = vpack.c.b16 %v734, %v730
    %v759 = vpack.c.b16 %v735, %v731
    %v760 = vpack.c.b16 %v736, %v732
    %v761 = vpack.c.b16 %v741, %v737
    %v762 = vpack.c.b16 %v742, %v738
    %v763 = vpack.c.b16 %v743, %v739
    %v764 = vpack.c.b16 %v744, %v740
    %v765 = vpack.c.b16 %v749, %v745
    %v766 = vpack.c.b16 %v750, %v746
    %v767 = vpack.c.b16 %v751, %v747
    %v768 = vpack.c.b16 %v752, %v748
    %vm785 = vcmask 523264
    %v787 = vsel %vm785, %v678, 0
    %789 = vmatpush.bf16.msra.mxu0 0
    %790 = vmatpush.bf16.msra.mxu0 0
    %791 = vmatpush.bf16.msra.mxu0 0
    %792 = vmatpush.bf16.msra.mxu0 0
    %793 = vmatpush.bf16.msra.mxu0 %v765
    %794 = vmatpush.bf16.msra.mxu0 %v761
    %795 = vmatpush.bf16.msra.mxu0 %v757
    %796 = vmatpush.bf16.msra.mxu0 %v753
    %797 = vmatmul.bf16.gmra.mxu0 %v787
    %v798 = vpop.f32.mrf.mxu0
    %v799 = vadd.f32 %v697, %v798
    %v800 = vpop.f32.mrf.mxu0
    %801 = vdwg.mxu0
    %802 = vmatpush.bf16.msra.mxu0 0
    %803 = vmatpush.bf16.msra.mxu0 0
    %804 = vmatpush.bf16.msra.mxu0 0
    %805 = vmatpush.bf16.msra.mxu0 0
    %806 = vmatpush.bf16.msra.mxu0 %v766
    %807 = vmatpush.bf16.msra.mxu0 %v762
    %808 = vmatpush.bf16.msra.mxu0 %v758
    %809 = vmatpush.bf16.msra.mxu0 %v754
    %810 = vmatmul.bf16.gmra.mxu0 %v787
    %v811 = vpop.f32.mrf.mxu0
    %v812 = vadd.f32 %v698, %v811
    %v813 = vpop.f32.mrf.mxu0
    %814 = vdwg.mxu0
    %815 = vmatpush.bf16.msra.mxu0 0
    %816 = vmatpush.bf16.msra.mxu0 0
    %817 = vmatpush.bf16.msra.mxu0 0
    %818 = vmatpush.bf16.msra.mxu0 0
    %819 = vmatpush.bf16.msra.mxu0 %v767
    %820 = vmatpush.bf16.msra.mxu0 %v763
    %821 = vmatpush.bf16.msra.mxu0 %v759
    %822 = vmatpush.bf16.msra.mxu0 %v755
    %823 = vmatmul.bf16.gmra.mxu0 %v787
    %v824 = vpop.f32.mrf.mxu0
    %v825 = vadd.f32 %v699, %v824
    %v826 = vpop.f32.mrf.mxu0
    %827 = vdwg.mxu0
    %828 = vmatpush.bf16.msra.mxu0 0
    %829 = vmatpush.bf16.msra.mxu0 0
    %830 = vmatpush.bf16.msra.mxu0 0
    %831 = vmatpush.bf16.msra.mxu0 0
    %832 = vmatpush.bf16.msra.mxu0 %v768
    %833 = vmatpush.bf16.msra.mxu0 %v764
    %834 = vmatpush.bf16.msra.mxu0 %v760
    %835 = vmatpush.bf16.msra.mxu0 %v756
    %836 = vmatmul.bf16.gmra.mxu0 %v787
    %v837 = vpop.f32.mrf.mxu0
    %v838 = vadd.f32 %v700, %v837
    %v839 = vpop.f32.mrf.mxu0
    %840 = vdwg.mxu0
    %v841 = vmax.f32 %v799, 0.0
    %v842 = vmax.f32 %v812, 0.0
    %v843 = vmax.f32 %v825, 0.0
    %v844 = vmax.f32 %v838, 0.0
    %v845 = vpack.c.bf16 %v841, %v841
    %v846 = vpack.c.bf16 %v842, %v842
    %v847 = vpack.c.bf16 %v843, %v843
    %v848 = vpack.c.bf16 %v844, %v844
    %v849 = vld [vmem:[%s5] sm:$0xf]
    %v850 = vld [vmem:[%s5 + $0x4] sm:$0xf]
    %v851 = vld [vmem:[%s5 + $0x8] sm:$0xf]
    %v852 = vld [vmem:[%s5 + $0xc] sm:$0xf]
    %v853 = vld [vmem:[%s5 + $0x10] sm:$0xf]
    %v854 = vld [vmem:[%s5 + $0x14] sm:$0xf]
    %v855 = vld [vmem:[%s5 + $0x18] sm:$0xf]
    %v856 = vld [vmem:[%s5 + $0x1c] sm:$0xf]
    %v857 = vld [vmem:[%s5 + $0x20] sm:$0xf]
    %v858 = vld [vmem:[%s5 + $0x24] sm:$0xf]
    %v859 = vld [vmem:[%s5 + $0x28] sm:$0xf]
    %v860 = vld [vmem:[%s5 + $0x2c] sm:$0xf]
    %v861 = vld [vmem:[%s5 + $0x30] sm:$0xf]
    %v862 = vld [vmem:[%s5 + $0x34] sm:$0xf]
    %v863 = vld [vmem:[%s5 + $0x38] sm:$0xf]
    %v864 = vld [vmem:[%s5 + $0x3c] sm:$0xf]
    %v865 = vld [vmem:[%s5 + $0x40] sm:$0xf]
    %v866 = vld [vmem:[%s5 + $0x44] sm:$0xf]
    %v867 = vld [vmem:[%s5 + $0x48] sm:$0xf]
    %v868 = vld [vmem:[%s5 + $0x4c] sm:$0xf]
    %v869 = vld [vmem:[%s5 + $0x50] sm:$0xf]
    %v870 = vld [vmem:[%s5 + $0x54] sm:$0xf]
    %v871 = vld [vmem:[%s5 + $0x58] sm:$0xf]
    %v872 = vld [vmem:[%s5 + $0x5c] sm:$0xf]
    %v873 = vld [vmem:[%s5 + $0x60] sm:$0xf]
    %v874 = vld [vmem:[%s5 + $0x64] sm:$0xf]
    %v875 = vld [vmem:[%s5 + $0x68] sm:$0xf]
    %v876 = vld [vmem:[%s5 + $0x6c] sm:$0xf]
    %v877 = vld [vmem:[%s5 + $0x70] sm:$0xf]
    %v878 = vld [vmem:[%s5 + $0x74] sm:$0xf]
    %v879 = vld [vmem:[%s5 + $0x78] sm:$0xf]
    %v880 = vld [vmem:[%s5 + $0x7c] sm:$0xf]
    %v881 = vld [vmem:[%s5 + $0x80] sm:$0xf]
    %v882 = vld [vmem:[%s5 + $0x84] sm:$0xf]
    %v883 = vld [vmem:[%s5 + $0x88] sm:$0xf]
    %v884 = vld [vmem:[%s5 + $0x8c] sm:$0xf]
    %v885 = vld [vmem:[%s5 + $0x90] sm:$0xf]
    %v886 = vld [vmem:[%s5 + $0x94] sm:$0xf]
    %v887 = vld [vmem:[%s5 + $0x98] sm:$0xf]
    %v888 = vld [vmem:[%s5 + $0x9c] sm:$0xf]
    %v889 = vld [vmem:[%s5 + $0xa0] sm:$0xf]
    %v890 = vld [vmem:[%s5 + $0xa4] sm:$0xf]
    %v891 = vld [vmem:[%s5 + $0xa8] sm:$0xf]
    %v892 = vld [vmem:[%s5 + $0xac] sm:$0xf]
    %v893 = vld [vmem:[%s5 + $0xb0] sm:$0xf]
    %v894 = vld [vmem:[%s5 + $0xb4] sm:$0xf]
    %v895 = vld [vmem:[%s5 + $0xb8] sm:$0xf]
    %v896 = vld [vmem:[%s5 + $0xbc] sm:$0xf]
    %v897 = vld [vmem:[%s5 + $0xc0] sm:$0xf]
    %v898 = vld [vmem:[%s5 + $0xc4] sm:$0xf]
    %v899 = vld [vmem:[%s5 + $0xc8] sm:$0xf]
    %v900 = vld [vmem:[%s5 + $0xcc] sm:$0xf]
    %v901 = vld [vmem:[%s5 + $0xd0] sm:$0xf]
    %v902 = vld [vmem:[%s5 + $0xd4] sm:$0xf]
    %v903 = vld [vmem:[%s5 + $0xd8] sm:$0xf]
    %v904 = vld [vmem:[%s5 + $0xdc] sm:$0xf]
    %v905 = vld [vmem:[%s5 + $0xe0] sm:$0xf]
    %v906 = vld [vmem:[%s5 + $0xe4] sm:$0xf]
    %v907 = vld [vmem:[%s5 + $0xe8] sm:$0xf]
    %v908 = vld [vmem:[%s5 + $0xec] sm:$0xf]
    %v909 = vld [vmem:[%s5 + $0xf0] sm:$0xf]
    %v910 = vld [vmem:[%s5 + $0xf4] sm:$0xf]
    %v911 = vld [vmem:[%s5 + $0xf8] sm:$0xf]
    %v912 = vld [vmem:[%s5 + $0xfc] sm:$0xf]
    %v913 = vld [vmem:[%s6] sm:$0x1]
    %v915 = vperm.slane %v913, 0
    %v981 = vunpack.c.l.b16 %v849
    %v982 = vunpack.c.l.b16 %v850
    %v983 = vunpack.c.l.b16 %v851
    %v984 = vunpack.c.l.b16 %v852
    %v985 = vunpack.c.l.b16 %v853
    %v986 = vunpack.c.l.b16 %v854
    %v987 = vunpack.c.l.b16 %v855
    %v988 = vunpack.c.l.b16 %v856
    %v989 = vunpack.c.l.b16 %v857
    %v990 = vunpack.c.l.b16 %v858
    %v991 = vunpack.c.l.b16 %v859
    %v992 = vunpack.c.l.b16 %v860
    %v993 = vunpack.c.l.b16 %v861
    %v994 = vunpack.c.l.b16 %v862
    %v995 = vunpack.c.l.b16 %v863
    %v996 = vunpack.c.l.b16 %v864
    %v997 = vunpack.c.l.b16 %v865
    %v998 = vunpack.c.l.b16 %v866
    %v999 = vunpack.c.l.b16 %v867
    %v1000 = vunpack.c.l.b16 %v868
    %v1001 = vunpack.c.l.b16 %v869
    %v1002 = vunpack.c.l.b16 %v870
    %v1003 = vunpack.c.l.b16 %v871
    %v1004 = vunpack.c.l.b16 %v872
    %v1005 = vunpack.c.l.b16 %v873
    %v1006 = vunpack.c.l.b16 %v874
    %v1007 = vunpack.c.l.b16 %v875
    %v1008 = vunpack.c.l.b16 %v876
    %v1009 = vunpack.c.l.b16 %v877
    %v1010 = vunpack.c.l.b16 %v878
    %v1011 = vunpack.c.l.b16 %v879
    %v1012 = vunpack.c.l.b16 %v880
    %v1013 = vunpack.c.l.b16 %v881
    %v1014 = vunpack.c.l.b16 %v882
    %v1015 = vunpack.c.l.b16 %v883
    %v1016 = vunpack.c.l.b16 %v884
    %v1017 = vunpack.c.l.b16 %v885
    %v1018 = vunpack.c.l.b16 %v886
    %v1019 = vunpack.c.l.b16 %v887
    %v1020 = vunpack.c.l.b16 %v888
    %v1021 = vunpack.c.l.b16 %v889
    %v1022 = vunpack.c.l.b16 %v890
    %v1023 = vunpack.c.l.b16 %v891
    %v1024 = vunpack.c.l.b16 %v892
    %v1025 = vunpack.c.l.b16 %v893
    %v1026 = vunpack.c.l.b16 %v894
    %v1027 = vunpack.c.l.b16 %v895
    %v1028 = vunpack.c.l.b16 %v896
    %v1029 = vunpack.c.l.b16 %v897
    %v1030 = vunpack.c.l.b16 %v898
    %v1031 = vunpack.c.l.b16 %v899
    %v1032 = vunpack.c.l.b16 %v900
    %v1033 = vunpack.c.l.b16 %v901
    %v1034 = vunpack.c.l.b16 %v902
    %v1035 = vunpack.c.l.b16 %v903
    %v1036 = vunpack.c.l.b16 %v904
    %v1037 = vunpack.c.l.b16 %v905
    %v1038 = vunpack.c.l.b16 %v906
    %v1039 = vunpack.c.l.b16 %v907
    %v1040 = vunpack.c.l.b16 %v908
    %v1041 = vunpack.c.l.b16 %v909
    %v1042 = vunpack.c.l.b16 %v910
    %v1043 = vunpack.c.l.b16 %v911
    %v1044 = vunpack.c.l.b16 %v912
    %v1045 = vpack.c.b16 %v982, %v981
    %v1046 = vpack.c.b16 %v984, %v983
    %v1047 = vpack.c.b16 %v986, %v985
    %v1048 = vpack.c.b16 %v988, %v987
    %v1049 = vpack.c.b16 %v990, %v989
    %v1050 = vpack.c.b16 %v992, %v991
    %v1051 = vpack.c.b16 %v994, %v993
    %v1052 = vpack.c.b16 %v996, %v995
    %v1053 = vpack.c.b16 %v998, %v997
    %v1054 = vpack.c.b16 %v1000, %v999
    %v1055 = vpack.c.b16 %v1002, %v1001
    %v1056 = vpack.c.b16 %v1004, %v1003
    %v1057 = vpack.c.b16 %v1006, %v1005
    %v1058 = vpack.c.b16 %v1008, %v1007
    %v1059 = vpack.c.b16 %v1010, %v1009
    %v1060 = vpack.c.b16 %v1012, %v1011
    %v1061 = vpack.c.b16 %v1014, %v1013
    %v1062 = vpack.c.b16 %v1016, %v1015
    %v1063 = vpack.c.b16 %v1018, %v1017
    %v1064 = vpack.c.b16 %v1020, %v1019
    %v1065 = vpack.c.b16 %v1022, %v1021
    %v1066 = vpack.c.b16 %v1024, %v1023
    %v1067 = vpack.c.b16 %v1026, %v1025
    %v1068 = vpack.c.b16 %v1028, %v1027
    %v1069 = vpack.c.b16 %v1030, %v1029
    %v1070 = vpack.c.b16 %v1032, %v1031
    %v1071 = vpack.c.b16 %v1034, %v1033
    %v1072 = vpack.c.b16 %v1036, %v1035
    %v1073 = vpack.c.b16 %v1038, %v1037
    %v1074 = vpack.c.b16 %v1040, %v1039
    %v1075 = vpack.c.b16 %v1042, %v1041
    %v1076 = vpack.c.b16 %v1044, %v1043
    %1109 = vmatpush.bf16.msra.mxu0 %v1052
    %1110 = vmatpush.bf16.msra.mxu0 %v1051
    %1111 = vmatpush.bf16.msra.mxu0 %v1050
    %1112 = vmatpush.bf16.msra.mxu0 %v1049
    %1113 = vmatpush.bf16.msra.mxu0 %v1048
    %1114 = vmatpush.bf16.msra.mxu0 %v1047
    %1115 = vmatpush.bf16.msra.mxu0 %v1046
    %1116 = vmatpush.bf16.msra.mxu0 %v1045
    %1117 = vmatmul.bf16.gmra.mxu0 %v845
    %v1118 = vpop.f32.mrf.mxu0
    %v1119 = vadd.f32 %v915, %v1118
    %v1120 = vpop.f32.mrf.mxu0
    %1121 = vdwg.mxu0
    %1122 = vmatpush.bf16.msra.mxu0 %v1060
    %1123 = vmatpush.bf16.msra.mxu0 %v1059
    %1124 = vmatpush.bf16.msra.mxu0 %v1058
    %1125 = vmatpush.bf16.msra.mxu0 %v1057
    %1126 = vmatpush.bf16.msra.mxu0 %v1056
    %1127 = vmatpush.bf16.msra.mxu0 %v1055
    %1128 = vmatpush.bf16.msra.mxu0 %v1054
    %1129 = vmatpush.bf16.msra.mxu0 %v1053
    %1130 = vmatmul.bf16.gmra.mxu0 %v846
    %v1131 = vpop.f32.mrf.mxu0
    %v1132 = vadd.f32 %v1119, %v1131
    %v1133 = vpop.f32.mrf.mxu0
    %1134 = vdwg.mxu0
    %1135 = vmatpush.bf16.msra.mxu0 %v1068
    %1136 = vmatpush.bf16.msra.mxu0 %v1067
    %1137 = vmatpush.bf16.msra.mxu0 %v1066
    %1138 = vmatpush.bf16.msra.mxu0 %v1065
    %1139 = vmatpush.bf16.msra.mxu0 %v1064
    %1140 = vmatpush.bf16.msra.mxu0 %v1063
    %1141 = vmatpush.bf16.msra.mxu0 %v1062
    %1142 = vmatpush.bf16.msra.mxu0 %v1061
    %1143 = vmatmul.bf16.gmra.mxu0 %v847
    %v1144 = vpop.f32.mrf.mxu0
    %v1145 = vadd.f32 %v1132, %v1144
    %v1146 = vpop.f32.mrf.mxu0
    %1147 = vdwg.mxu0
    %1148 = vmatpush.bf16.msra.mxu0 %v1076
    %1149 = vmatpush.bf16.msra.mxu0 %v1075
    %1150 = vmatpush.bf16.msra.mxu0 %v1074
    %1151 = vmatpush.bf16.msra.mxu0 %v1073
    %1152 = vmatpush.bf16.msra.mxu0 %v1072
    %1153 = vmatpush.bf16.msra.mxu0 %v1071
    %1154 = vmatpush.bf16.msra.mxu0 %v1070
    %1155 = vmatpush.bf16.msra.mxu0 %v1069
    %1156 = vmatmul.bf16.gmra.mxu0 %v848
    %v1157 = vpop.f32.mrf.mxu0
    %v1158 = vadd.f32 %v1145, %v1157
    %v1159 = vpop.f32.mrf.mxu0
    %1160 = vdwg.mxu0
    %vm1161 = vcmask 41984
    %1162 = vst.msk [vmem:[#allocation2] sm:$0x3] %vm1161, %v1158
    // Predicated region
    $region30: #{neural_network_forward.5} parent=1 // pred_check
      _
    $region31: #{neural_network_forward.5} parent=1 // pred_check_branch
      %1164 = sbr.rel (0) target = $region33
    $region32: #{neural_network_forward.5} parent=1 // pred_region
      %1166 = vsyncadd [#allocation3], 0
      %s1168 = sshll.u32 [#allocation2], 4
      %s1169 = int_to_ptr.vmem [resolvable:$true] %s1168
      %s1170 = sshll.u32 %s7, 4
      %s1171 = int_to_ptr.hbm [resolvable:$true] %s1170
      %1173 = dma.vmem_to_hbm [thread:$0]  %s1169, 32, %s1171, [#allocation3]
    $region33: #{neural_network_forward.5} parent=1 // pred_fallthru
      _
    // Predicated region
    $region34: #{neural_network_forward.5} parent=1 // pred_check
      _
    $region35: #{neural_network_forward.5} parent=1 // pred_check_branch
      %1175 = sbr.rel (0) target = $region37
    $region36: #{neural_network_forward.5} parent=1 // pred_region
      %1177 = dma.done [#allocation3], 32
    $region37: #{neural_network_forward.5} parent=1 // pred_fallthru
      _
    %1178 = vsyncpa [#allocation3], 1

</llo_original>
